<compile_context>
chip_gen: v7x
topology: tpu7x:2x2x1
jax: 0.10.0
libtpu: 0.0.40
codegen_flags: <defaults>
</compile_context>

<pallas_src>
import jax
import jax.numpy as jnp
from jax import lax
from jax.experimental import pallas as pl
from jax.experimental.pallas import tpu as pltpu


# ----------------------------------------------------------------------------- kernel ----
def submodal_proj_kernel(x_ref, w1_ref, wc_ref, bias_ref, gamma_ref, beta_ref, o_ref, h1_ref):
    # x_ref:     (TB*Cp, E)  bf16, b-major rows (row = b*Cp + c) for this batch tile
    # w1_ref:    (E, P)      bf16   (grid-invariant Linear weight)
    # wc_ref:    (SC, Cp)    bf16   (S chunk of the Conv1d(k=1) weight)
    # bias_ref:  (SC, P)     f32    (fused Linear+Conv bias for this S chunk)
    # gamma_ref: (1, P) f32, beta_ref: (1, P) f32   (grid-invariant)
    # o_ref:     (TB, SC, P) output block (lane-dense: last dim = P)
    # h1_ref:    (TB*Cp, P)  bf16 VMEM scratch; persists across the S-chunk grid axis
    TB, SC, P = o_ref.shape
    Cp = wc_ref.shape[1]

    # --- Stage 1 (once per batch tile): Linear(E -> P) as one tall MXU matmul. ---
    @pl.when(pl.program_id(1) == 0)
    def _():
        h1 = jnp.dot(x_ref[...], w1_ref[...], preferred_element_type=jnp.float32)
        h1_ref[...] = h1.astype(h1_ref.dtype)

    wc = wc_ref[...]          # (SC, Cp)
    bias = bias_ref[...]      # (SC, P)  f32
    gamma = gamma_ref[...]    # (1, P)   f32
    beta = beta_ref[...]      # (1, P)   f32
    inv_p = jnp.float32(1.0 / P)

    # --- Stage 2+3 (per batch element): Conv1d(k=1) dot + LayerNorm over P. ---
    # fori_loop (not a Python for) bounds live ranges to one batch element at a time.
    def body(b, carry):
        row0 = pl.multiple_of(b * Cp, Cp)
        h1_b = h1_ref[pl.ds(row0, Cp), :]                                    # (Cp, P)
        h2 = jnp.dot(wc, h1_b, preferred_element_type=jnp.float32) + bias    # (SC, P) f32
        mean = jnp.sum(h2, axis=-1, keepdims=True) * inv_p                   # (SC, 1)
        ex2 = jnp.sum(h2 * h2, axis=-1, keepdims=True) * inv_p               # (SC, 1)
        var = jnp.maximum(ex2 - mean * mean, 0.0)                            # clamp cancellation
        rstd = lax.rsqrt(var + jnp.float32(1e-5))                            # EUP
        mrs = mean * rstd                                                    # (SC, 1)
        # gamma/beta are per-column so a per-row scale/shift can't absorb them; this
        # ordering forms two mul-add chains (FMA-friendly) instead of 4 separate passes.
        y = (h2 * rstd - mrs) * gamma + beta                                 # (SC, P)
        o_ref[b, :, :] = y.astype(o_ref.dtype)
        return carry

    lax.fori_loop(0, TB, body, 0)


# ------------------------------------------------------------------------ tile picking ----
def _tpu_vmem_and_cores():
    """Best-effort (vmem_bytes, num_tensorcores); conservative defaults if unavailable."""
    vmem_bytes = 64 << 20     # v7x per-core VMEM — the smallest across v5e/v6e/v7x
    num_cores = 2             # conservative: assume megacore so >= 2 parallel batch tiles
    try:
        info = pltpu.get_tpu_info()
        for name in ("vmem_capacity_bytes", "vmem_size_bytes", "vmem_bytes"):
            v = getattr(info, name, None)
            if v:
                vmem_bytes = int(v)
                break
        for name in ("num_tensorcores", "tensorcores_per_chip", "num_cores", "core_count"):
            v = getattr(info, name, None)
            if v:
                num_cores = int(v)
                break
    except Exception:
        pass
    return vmem_bytes, num_cores


def _vmem_need_bytes(tb, sc, cp, e, p, in_bytes, out_bytes):
    """Per-grid-step VMEM footprint estimate for a (tb, sc) tiling."""
    x_blk = 2 * tb * cp * e * in_bytes       # double-buffered x tile
    w1_res = e * p * in_bytes                # grid-invariant Linear weight (single buffer)
    wc_blk = 2 * sc * cp * in_bytes          # S-chunked conv weight
    bias_blk = 2 * sc * p * 4                # S-chunked fused bias
    gb_res = 2 * p * 4                       # gamma + beta
    h1_scr = tb * cp * p * in_bytes          # h1 scratch
    out_blk = 2 * tb * sc * p * out_bytes    # double-buffered output block
    live = 4 * sc * p * 4                    # h2 / h2^2 / y working values inside the body
    return x_blk + w1_res + wc_blk + bias_blk + gb_res + h1_scr + out_blk + live


def _choose_tiles(b, cp, s, e, p, vmem_budget, num_cores, in_bytes, out_bytes):
    """Largest (TB, S_CHUNK) by TB*S_CHUNK (tie-break: TB) whose footprint fits the VMEM
    budget.  On multi-TensorCore chips keep >= num_cores batch tiles so the 'parallel'
    grid axis can shard across cores."""
    tb_divs = [d for d in range(1, b + 1) if b % d == 0]
    sc_divs = [d for d in range(1, s + 1) if s % d == 0 and (d % 8 == 0 or d == s)]
    if num_cores >= 2:
        multi = [d for d in tb_divs if b // d >= num_cores]
        if multi:
            tb_divs = multi
    best = None
    for tb in tb_divs:
        for sc in sc_divs:
            if _vmem_need_bytes(tb, sc, cp, e, p, in_bytes, out_bytes) <= vmem_budget:
                key = (tb * sc, tb)
                if best is None or key > best[0]:
                    best = (key, (tb, sc))
    if best is not None:
        return best[1]
    return min(tb_divs), min(sc_divs)


# ----------------------------------------------------------------------------- wrapper ----
def submodal_proj(x, w1, b1, wc, bc, gamma, beta, *, batch_tile=None, s_chunk=None,
                  compute_dtype=jnp.bfloat16, out_dtype=jnp.float32):
    """x: (B, C, E).  w1: (E, P) (torch Linear weight transposed), b1: (P,),
    wc: (S, C) (Conv1d k=1 weight squeezed), bc: (S,), gamma/beta: (P,).
    Returns (B, S, P) in out_dtype."""
    B, C, E = x.shape
    assert w1.shape[0] == E
    P = w1.shape[1]
    S, Cw = wc.shape
    assert Cw == C

    # Fold both biases into one (S, P) additive constant (Conv1d(k=1) is linear):
    #   Wc @ (h + b1) + bc == Wc @ h + rowsum(Wc) * b1 + bc.
    b_fused = (wc.sum(axis=1, keepdims=True) * b1[None, :] + bc[:, None]).astype(jnp.float32)

    # Zero-pad the channel dim so every block / h1 slice stays (sublane, lane) tile aligned
    # (16 rows covers bf16 sublane packing; padded channels are exact zeros -> no effect).
    in_bytes = jnp.dtype(compute_dtype).itemsize
    out_bytes = jnp.dtype(out_dtype).itemsize
    row_align = 8 * max(1, 4 // in_bytes)
    Cp = -(-C // row_align) * row_align
    if Cp != C:
        x = jnp.pad(x, ((0, 0), (0, Cp - C), (0, 0)))
        wc = jnp.pad(wc, ((0, 0), (0, Cp - C)))

    # VMEM-aware tile selection.
    vmem_bytes, num_cores = _tpu_vmem_and_cores()
    vmem_budget = int(0.45 * vmem_bytes)
    TB, SC = _choose_tiles(B, Cp, S, E, P, vmem_budget, num_cores, in_bytes, out_bytes)
    if batch_tile is not None:
        TB = batch_tile
    if s_chunk is not None:
        SC = s_chunk
    assert B % TB == 0 and S % SC == 0, "tile sizes must divide B and S"
    assert (TB * Cp) % 8 == 0 and (SC % 8 == 0 or SC == S), "blocks violate the (8,128) rule"
    num_b_tiles, num_s_chunks = B // TB, S // SC

    # Layout plumbing + bf16 casts on the matmul path (LayerNorm math stays f32).
    x2d = x.reshape(B * Cp, E).astype(compute_dtype)       # b-major rows: row = b*Cp + c
    w1c = w1.astype(compute_dtype)
    wcc = wc.astype(compute_dtype)
    g2 = gamma.reshape(1, P).astype(jnp.float32)
    bt2 = beta.reshape(1, P).astype(jnp.float32)

    need = _vmem_need_bytes(TB, SC, Cp, E, P, in_bytes, out_bytes)
    vmem_limit = int(max(32 << 20, min(2 * need, int(0.9 * vmem_bytes))))

    cost = pl.CostEstimate(
        flops=2 * B * Cp * E * P + 2 * B * S * Cp * P,
        transcendentals=B * S,
        bytes_accessed=(x2d.size * in_bytes + w1c.size * in_bytes + wcc.size * in_bytes
                        + b_fused.size * 4 + g2.size * 4 + bt2.size * 4
                        + B * S * P * out_bytes),
    )

    def call(single_buffer_invariants):
        def inv_spec(shape, imap):
            if single_buffer_invariants:
                return pl.BlockSpec(shape, imap, pipeline_mode=pl.Buffered(buffer_count=1))
            return pl.BlockSpec(shape, imap)

        grid_spec = pltpu.PrefetchScalarGridSpec(
            num_scalar_prefetch=0,
            grid=(num_b_tiles, num_s_chunks),
            in_specs=[
                pl.BlockSpec((TB * Cp, E), lambda i, s: (i, 0)),   # x tile (b-major rows)
                inv_spec((E, P), lambda i, s: (0, 0)),             # W1 (grid-invariant)
                pl.BlockSpec((SC, Cp), lambda i, s: (s, 0)),       # Wc chunk
                pl.BlockSpec((SC, P), lambda i, s: (s, 0)),        # fused bias chunk
                inv_spec((1, P), lambda i, s: (0, 0)),             # gamma
                inv_spec((1, P), lambda i, s: (0, 0)),             # beta
            ],
            out_specs=pl.BlockSpec((TB, SC, P), lambda i, s: (i, s, 0)),   # lane-dense
            scratch_shapes=[pltpu.VMEM((TB * Cp, P), compute_dtype)],      # h1 scratch
        )
        return pl.pallas_call(
            submodal_proj_kernel,
            out_shape=jax.ShapeDtypeStruct((B, S, P), out_dtype),
            grid_spec=grid_spec,
            compiler_params=pltpu.CompilerParams(
                dimension_semantics=("parallel", "arbitrary"),
                vmem_limit_bytes=vmem_limit,
            ),
            cost_estimate=cost,
        )(x2d, w1c, wcc, b_fused, g2, bt2)

    try:
        return call(True)
    except Exception:
        # Fallback if this JAX build rejects single-buffered (pl.Buffered(1)) BlockSpecs.
        return call(False)


# -------------------------------------------------------------------------- references ----
def submodal_proj_ref_f32(x, w1, b1, wc, bc, gamma, beta, eps=1e-5):
    """Pure-f32 reference mirroring the PyTorch forward."""
    h1 = jnp.einsum("bce,ep->bcp", x, w1, precision=lax.Precision.HIGHEST) + b1
    h2 = jnp.einsum("sc,bcp->bsp", wc, h1, precision=lax.Precision.HIGHEST) + bc[None, :, None]
    mean = jnp.mean(h2, axis=-1, keepdims=True)
    var = jnp.mean((h2 - mean) ** 2, axis=-1, keepdims=True)
    return (h2 - mean) / jnp.sqrt(var + eps) * gamma + beta


def submodal_proj_ref_matched(x, w1, b1, wc, bc, gamma, beta,
                              compute_dtype=jnp.bfloat16, eps=1e-5):
    """Reference mirroring the kernel's numerics (bf16 matmul inputs, f32 accumulation,
    fused bias, one-pass clamped variance) for a tight correctness check."""
    xb = x.astype(compute_dtype)
    w1b = w1.astype(compute_dtype)
    wcb = wc.astype(compute_dtype)
    h1 = jnp.einsum("bce,ep->bcp", xb, w1b, preferred_element_type=jnp.float32)
    h1 = h1.astype(compute_dtype)
    b_fused = wc.sum(axis=1, keepdims=True) * b1[None, :] + bc[:, None]
    h2 = jnp.einsum("sc,bcp->bsp", wcb, h1, preferred_element_type=jnp.float32) + b_fused
    mean = jnp.mean(h2, axis=-1, keepdims=True)
    var = jnp.maximum(jnp.mean(h2 * h2, axis=-1, keepdims=True) - mean * mean, 0.0)
    rstd = lax.rsqrt(var + eps)
    return (h2 * rstd - mean * rstd) * gamma + beta


# -------------------------------------------------------------------------------- main ----
if __name__ == "__main__":
    # Small shapes consistent with the module's structure (real module: C=63, S=256,
    # E=1024, P=1280).  C=12 exercises the channel-padding path (12 -> 16).
    B, C, E, P, S = 4, 12, 32, 128, 16

    key = jax.random.PRNGKey(0)
    kx, k1, k2, k3, k4, k5, k6 = jax.random.split(key, 7)

    x = jax.random.normal(kx, (B, C, E), dtype=jnp.float32)
    w1 = jax.random.normal(k1, (E, P), dtype=jnp.float32) * 0.05   # torch Linear weight, transposed
    b1 = jax.random.normal(k2, (P,), dtype=jnp.float32) * 0.05
    wc = jax.random.normal(k3, (S, C), dtype=jnp.float32) * 0.1    # Conv1d (S, C, 1) squeezed
    bc = jax.random.normal(k4, (S,), dtype=jnp.float32) * 0.1
    gamma = 1.0 + 0.05 * jax.random.normal(k5, (P,), dtype=jnp.float32)
    beta = 0.05 * jax.random.normal(k6, (P,), dtype=jnp.float32)

    out = jax.block_until_ready(submodal_proj(x, w1, b1, wc, bc, gamma, beta))
    assert out.shape == (B, S, P) and out.dtype == jnp.float32

    # Tight check vs a reference that mirrors the kernel's bf16-input numerics.
    ref_matched = submodal_proj_ref_matched(x, w1, b1, wc, bc, gamma, beta)
    assert jnp.allclose(out, ref_matched, atol=2e-3, rtol=2e-3), \
        "Pallas kernel mismatch vs numerics-matched reference"

    # Looser sanity check vs the pure-f32 module semantics (bf16 matmul inputs only).
    ref_f32 = submodal_proj_ref_f32(x, w1, b1, wc, bc, gamma, beta)
    assert jnp.allclose(out, ref_f32, atol=5e-2, rtol=5e-2), \
        "Pallas kernel mismatch vs f32 module reference"

    print("KERNEL_OK")
</pallas_src>

<mosaic_0001>
module attributes {stable_mosaic.version = 11 : i64} {
  func.func @submodal_proj_kernel(%arg0: i32, %arg1: i32, %arg2: memref<32x32xbf16, #tpu.memory_space<vmem>>, %arg3: memref<32x128xbf16, #tpu.memory_space<vmem>>, %arg4: memref<16x16xbf16, #tpu.memory_space<vmem>>, %arg5: memref<16x128xf32, #tpu.memory_space<vmem>>, %arg6: memref<1x128xf32, #tpu.memory_space<vmem>>, %arg7: memref<1x128xf32, #tpu.memory_space<vmem>>, %arg8: memref<2x16x128xf32, #tpu.memory_space<vmem>>, %arg9: memref<32x128xbf16, #tpu.memory_space<vmem>>) attributes {dimension_semantics = [#tpu.dimension_semantics<parallel>, #tpu.dimension_semantics<arbitrary>], iteration_bounds = array<i64: 2, 1>, scalar_prefetch = 0 : i64, scratch_operands = 1 : i64, tpu.core_type = #tpu.core_type<tc>, window_params = [{transform_indices = @transform_0, window_bounds = array<i64: 32, 32>}, {pipeline_mode = #tpu.pipeline_mode<synchronous>, transform_indices = @transform_1, window_bounds = array<i64: 32, 128>}, {transform_indices = @transform_2, window_bounds = array<i64: 16, 16>}, {transform_indices = @transform_3, window_bounds = array<i64: 16, 128>}, {pipeline_mode = #tpu.pipeline_mode<synchronous>, transform_indices = @transform_4, window_bounds = array<i64: 1, 128>}, {pipeline_mode = #tpu.pipeline_mode<synchronous>, transform_indices = @transform_5, window_bounds = array<i64: 1, 128>}, {transform_indices = @transform_6, window_bounds = array<i64: 2, 16, 128>}]} {
    %c0_i32 = arith.constant 0 : i32
    %0 = arith.cmpi eq, %arg1, %c0_i32 : i32
    %1 = arith.extui %0 : i1 to i32
    %c0_i32_0 = arith.constant 0 : i32
    %2 = arith.cmpi ne, %1, %c0_i32_0 : i32
    scf.if %2 {
      %c0_10 = arith.constant 0 : index
      %c0_11 = arith.constant 0 : index
      %8 = vector.load %arg2[%c0_10, %c0_11] : memref<32x32xbf16, #tpu.memory_space<vmem>>, vector<32x32xbf16>
      %c0_12 = arith.constant 0 : index
      %c0_13 = arith.constant 0 : index
      %9 = vector.load %arg3[%c0_12, %c0_13] : memref<32x128xbf16, #tpu.memory_space<vmem>>, vector<32x128xbf16>
      %cst_14 = arith.constant dense<0.000000e+00> : vector<32x128xf32>
      %10 = tpu.matmul %8, %9, %cst_14 {dimension_numbers = #tpu.dot_dimension_numbers<[1], [0], [0], [1], [0, 0, 1, 1], [], []>} : vector<32x32xbf16>, vector<32x128xbf16>, vector<32x128xf32> -> vector<32x128xf32>
      %11 = arith.truncf %10 : vector<32x128xf32> to vector<32x128xbf16>
      %c0_15 = arith.constant 0 : index
      %c0_16 = arith.constant 0 : index
      %12 = vector.load %arg9[%c0_15, %c0_16] : memref<32x128xbf16, #tpu.memory_space<vmem>>, vector<32x128xbf16>
      tpu.vector_store %arg9[%c0_15, %c0_16], %11 {strides = array<i32>} : memref<32x128xbf16, #tpu.memory_space<vmem>>, vector<32x128xbf16>,
    } else {
    }
    %c0 = arith.constant 0 : index
    %c0_1 = arith.constant 0 : index
    %3 = vector.load %arg4[%c0, %c0_1] : memref<16x16xbf16, #tpu.memory_space<vmem>>, vector<16x16xbf16>
    %c0_2 = arith.constant 0 : index
    %c0_3 = arith.constant 0 : index
    %4 = vector.load %arg5[%c0_2, %c0_3] : memref<16x128xf32, #tpu.memory_space<vmem>>, vector<16x128xf32>
    %c0_4 = arith.constant 0 : index
    %c0_5 = arith.constant 0 : index
    %5 = vector.load %arg6[%c0_4, %c0_5] : memref<1x128xf32, #tpu.memory_space<vmem>>, vector<1x128xf32>
    %c0_6 = arith.constant 0 : index
    %c0_7 = arith.constant 0 : index
    %6 = vector.load %arg7[%c0_6, %c0_7] : memref<1x128xf32, #tpu.memory_space<vmem>>, vector<1x128xf32>
    %cst = arith.constant 7.812500e-03 : f32
    %c0_i32_8 = arith.constant 0 : i32
    %c2_i32 = arith.constant 2 : i32
    %7 = arith.addi %c0_i32_8, %c2_i32 : i32
    %c1_i32 = arith.constant 1 : i32
    scf.for %arg10 = %c0_i32_8 to %7 step %c1_i32  : i32 {
      %c16_i32 = arith.constant 16 : i32
      %8 = arith.muli %arg10, %c16_i32 : i32
      %9 = tpu.assume_multiple %8, 16 : i32
      %10 = arith.index_cast %9 : i32 to index
      %c0_10 = arith.constant 0 : index
      %11 = vector.load %arg9[%10, %c0_10] : memref<32x128xbf16, #tpu.memory_space<vmem>>, vector<16x128xbf16>
      %cst_11 = arith.constant dense<0.000000e+00> : vector<16x128xf32>
      %12 = tpu.matmul %3, %11, %cst_11 {dimension_numbers = #tpu.dot_dimension_numbers<[1], [0], [0], [1], [0, 0, 1, 1], [], []>} : vector<16x16xbf16>, vector<16x128xbf16>, vector<16x128xf32> -> vector<16x128xf32>
      %13 = arith.addf %12, %4 : vector<16x128xf32>
      %cst_12 = arith.constant dense<0.000000e+00> : vector<16xf32>
      %14 = vector.multi_reduction <add>, %13, %cst_12 [1] : vector<16x128xf32> to vector<16xf32>
      %15 = vector.shape_cast %14 : vector<16xf32> to vector<16x1xf32>
      %16 = vector.broadcast %cst : f32 to vector<16x1xf32>
      %17 = arith.mulf %15, %16 : vector<16x1xf32>
      %18 = arith.mulf %13, %13 : vector<16x128xf32>
      %cst_13 = arith.constant dense<0.000000e+00> : vector<16xf32>
      %19 = vector.multi_reduction <add>, %18, %cst_13 [1] : vector<16x128xf32> to vector<16xf32>
      %20 = vector.shape_cast %19 : vector<16xf32> to vector<16x1xf32>
      %21 = vector.broadcast %cst : f32 to vector<16x1xf32>
      %22 = arith.mulf %20, %21 : vector<16x1xf32>
      %23 = arith.mulf %17, %17 : vector<16x1xf32>
      %24 = arith.subf %22, %23 : vector<16x1xf32>
      %cst_14 = arith.constant 0.000000e+00 : f32
      %25 = vector.broadcast %cst_14 : f32 to vector<16x1xf32>
      %26 = arith.maximumf %24, %25 : vector<16x1xf32>
      %cst_15 = arith.constant 9.99999974E-6 : f32
      %27 = vector.broadcast %cst_15 : f32 to vector<16x1xf32>
      %28 = arith.addf %26, %27 : vector<16x1xf32>
      %29 = math.rsqrt %28 : vector<16x1xf32>
      %30 = arith.mulf %17, %29 : vector<16x1xf32>
      %31 = vector.broadcast %29 : vector<16x1xf32> to vector<16x128xf32>
      %32 = arith.mulf %13, %31 : vector<16x128xf32>
      %33 = vector.broadcast %30 : vector<16x1xf32> to vector<16x128xf32>
      %34 = arith.subf %32, %33 : vector<16x128xf32>
      %35 = vector.broadcast %5 : vector<1x128xf32> to vector<16x128xf32>
      %36 = arith.mulf %34, %35 : vector<16x128xf32>
      %37 = vector.broadcast %6 : vector<1x128xf32> to vector<16x128xf32>
      %38 = arith.addf %36, %37 : vector<16x128xf32>
      %39 = arith.index_cast %arg10 : i32 to index
      %c0_16 = arith.constant 0 : index
      %c0_17 = arith.constant 0 : index
      %40 = vector.load %arg8[%39, %c0_16, %c0_17] : memref<2x16x128xf32, #tpu.memory_space<vmem>>, vector<1x16x128xf32>
      %41 = vector.shape_cast %40 : vector<1x16x128xf32> to vector<16x128xf32>
      %42 = vector.shape_cast %38 : vector<16x128xf32> to vector<1x16x128xf32>
      tpu.vector_store %arg8[%39, %c0_16, %c0_17], %42 {strides = array<i32>} : memref<2x16x128xf32, #tpu.memory_space<vmem>>, vector<1x16x128xf32>,
    }
    %c2_i32_9 = arith.constant 2 : i32
    return
  }
  func.func @transform_0(%arg0: i32, %arg1: i32) -> (i32, i32) {
    %c0_i32 = arith.constant 0 : i32
    %c0_i32_0 = arith.constant 0 : i32
    return %arg0, %c0_i32 : i32, i32
  }
  func.func @transform_1(%arg0: i32, %arg1: i32) -> (i32, i32) {
    %c0_i32 = arith.constant 0 : i32
    %c0_i32_0 = arith.constant 0 : i32
    %c0_i32_1 = arith.constant 0 : i32
    return %c0_i32, %c0_i32_0 : i32, i32
  }
  func.func @transform_2(%arg0: i32, %arg1: i32) -> (i32, i32) {
    %c0_i32 = arith.constant 0 : i32
    %c0_i32_0 = arith.constant 0 : i32
    return %arg1, %c0_i32 : i32, i32
  }
  func.func @transform_3(%arg0: i32, %arg1: i32) -> (i32, i32) {
    %c0_i32 = arith.constant 0 : i32
    %c0_i32_0 = arith.constant 0 : i32
    return %arg1, %c0_i32 : i32, i32
  }
  func.func @transform_4(%arg0: i32, %arg1: i32) -> (i32, i32) {
    %c0_i32 = arith.constant 0 : i32
    %c0_i32_0 = arith.constant 0 : i32
    %c0_i32_1 = arith.constant 0 : i32
    return %c0_i32, %c0_i32_0 : i32, i32
  }
  func.func @transform_5(%arg0: i32, %arg1: i32) -> (i32, i32) {
    %c0_i32 = arith.constant 0 : i32
    %c0_i32_0 = arith.constant 0 : i32
    %c0_i32_1 = arith.constant 0 : i32
    return %c0_i32, %c0_i32_0 : i32, i32
  }
  func.func @transform_6(%arg0: i32, %arg1: i32) -> (i32, i32, i32) {
    %c0_i32 = arith.constant 0 : i32
    %c0_i32_0 = arith.constant 0 : i32
    return %arg0, %arg1, %c0_i32 : i32, i32, i32
  }
}

module attributes {stable_mosaic.version = 11 : i64} {
  func.func @submodal_proj_kernel(%arg0: i32, %arg1: i32, %arg2: memref<32x32xbf16, #tpu.memory_space<vmem>>, %arg3: memref<32x128xbf16, #tpu.memory_space<vmem>>, %arg4: memref<16x16xbf16, #tpu.memory_space<vmem>>, %arg5: memref<16x128xf32, #tpu.memory_space<vmem>>, %arg6: memref<1x128xf32, #tpu.memory_space<vmem>>, %arg7: memref<1x128xf32, #tpu.memory_space<vmem>>, %arg8: memref<2x16x128xf32, #tpu.memory_space<vmem>>, %arg9: memref<32x128xbf16, #tpu.memory_space<vmem>>) attributes {dimension_semantics = [#tpu.dimension_semantics<parallel>, #tpu.dimension_semantics<arbitrary>], iteration_bounds = array<i64: 2, 1>, scalar_prefetch = 0 : i64, scratch_operands = 1 : i64, tpu.core_type = #tpu.core_type<tc>, window_params = [{transform_indices = @transform_0, window_bounds = array<i64: 32, 32>}, {pipeline_mode = #tpu.pipeline_mode<synchronous>, transform_indices = @transform_1, window_bounds = array<i64: 32, 128>}, {transform_indices = @transform_2, window_bounds = array<i64: 16, 16>}, {transform_indices = @transform_3, window_bounds = array<i64: 16, 128>}, {pipeline_mode = #tpu.pipeline_mode<synchronous>, transform_indices = @transform_4, window_bounds = array<i64: 1, 128>}, {pipeline_mode = #tpu.pipeline_mode<synchronous>, transform_indices = @transform_5, window_bounds = array<i64: 1, 128>}, {transform_indices = @transform_6, window_bounds = array<i64: 2, 16, 128>}]} {
    %c0_i32 = arith.constant 0 : i32
    %0 = arith.cmpi eq, %arg1, %c0_i32 : i32
    %1 = arith.extui %0 : i1 to i32
    %c0_i32_0 = arith.constant 0 : i32
    %2 = arith.cmpi ne, %1, %c0_i32_0 : i32
    scf.if %2 {
      %c0_10 = arith.constant 0 : index
      %c0_11 = arith.constant 0 : index
      %8 = vector.load %arg2[%c0_10, %c0_11] : memref<32x32xbf16, #tpu.memory_space<vmem>>, vector<32x32xbf16>
      %c0_12 = arith.constant 0 : index
      %c0_13 = arith.constant 0 : index
      %9 = vector.load %arg3[%c0_12, %c0_13] : memref<32x128xbf16, #tpu.memory_space<vmem>>, vector<32x128xbf16>
      %cst_14 = arith.constant dense<0.000000e+00> : vector<32x128xf32>
      %10 = tpu.matmul %8, %9, %cst_14 {dimension_numbers = #tpu.dot_dimension_numbers<[1], [0], [0], [1], [0, 0, 1, 1], [], []>} : vector<32x32xbf16>, vector<32x128xbf16>, vector<32x128xf32> -> vector<32x128xf32>
      %11 = arith.truncf %10 : vector<32x128xf32> to vector<32x128xbf16>
      %c0_15 = arith.constant 0 : index
      %c0_16 = arith.constant 0 : index
      %12 = vector.load %arg9[%c0_15, %c0_16] : memref<32x128xbf16, #tpu.memory_space<vmem>>, vector<32x128xbf16>
      tpu.vector_store %arg9[%c0_15, %c0_16], %11 {strides = array<i32>} : memref<32x128xbf16, #tpu.memory_space<vmem>>, vector<32x128xbf16>,
    } else {
    }
    %c0 = arith.constant 0 : index
    %c0_1 = arith.constant 0 : index
    %3 = vector.load %arg4[%c0, %c0_1] : memref<16x16xbf16, #tpu.memory_space<vmem>>, vector<16x16xbf16>
    %c0_2 = arith.constant 0 : index
    %c0_3 = arith.constant 0 : index
    %4 = vector.load %arg5[%c0_2, %c0_3] : memref<16x128xf32, #tpu.memory_space<vmem>>, vector<16x128xf32>
    %c0_4 = arith.constant 0 : index
    %c0_5 = arith.constant 0 : index
    %5 = vector.load %arg6[%c0_4, %c0_5] : memref<1x128xf32, #tpu.memory_space<vmem>>, vector<1x128xf32>
    %c0_6 = arith.constant 0 : index
    %c0_7 = arith.constant 0 : index
    %6 = vector.load %arg7[%c0_6, %c0_7] : memref<1x128xf32, #tpu.memory_space<vmem>>, vector<1x128xf32>
    %cst = arith.constant 7.812500e-03 : f32
    %c0_i32_8 = arith.constant 0 : i32
    %c2_i32 = arith.constant 2 : i32
    %7 = arith.addi %c0_i32_8, %c2_i32 : i32
    %c1_i32 = arith.constant 1 : i32
    scf.for %arg10 = %c0_i32_8 to %7 step %c1_i32  : i32 {
      %c16_i32 = arith.constant 16 : i32
      %8 = arith.muli %arg10, %c16_i32 : i32
      %9 = tpu.assume_multiple %8, 16 : i32
      %10 = arith.index_cast %9 : i32 to index
      %c0_10 = arith.constant 0 : index
      %11 = vector.load %arg9[%10, %c0_10] : memref<32x128xbf16, #tpu.memory_space<vmem>>, vector<16x128xbf16>
      %cst_11 = arith.constant dense<0.000000e+00> : vector<16x128xf32>
      %12 = tpu.matmul %3, %11, %cst_11 {dimension_numbers = #tpu.dot_dimension_numbers<[1], [0], [0], [1], [0, 0, 1, 1], [], []>} : vector<16x16xbf16>, vector<16x128xbf16>, vector<16x128xf32> -> vector<16x128xf32>
      %13 = arith.addf %12, %4 : vector<16x128xf32>
      %cst_12 = arith.constant dense<0.000000e+00> : vector<16xf32>
      %14 = vector.multi_reduction <add>, %13, %cst_12 [1] : vector<16x128xf32> to vector<16xf32>
      %15 = vector.shape_cast %14 : vector<16xf32> to vector<16x1xf32>
      %16 = vector.broadcast %cst : f32 to vector<16x1xf32>
      %17 = arith.mulf %15, %16 : vector<16x1xf32>
      %18 = arith.mulf %13, %13 : vector<16x128xf32>
      %cst_13 = arith.constant dense<0.000000e+00> : vector<16xf32>
      %19 = vector.multi_reduction <add>, %18, %cst_13 [1] : vector<16x128xf32> to vector<16xf32>
      %20 = vector.shape_cast %19 : vector<16xf32> to vector<16x1xf32>
      %21 = vector.broadcast %cst : f32 to vector<16x1xf32>
      %22 = arith.mulf %20, %21 : vector<16x1xf32>
      %23 = arith.mulf %17, %17 : vector<16x1xf32>
      %24 = arith.subf %22, %23 : vector<16x1xf32>
      %cst_14 = arith.constant 0.000000e+00 : f32
      %25 = vector.broadcast %cst_14 : f32 to vector<16x1xf32>
      %26 = arith.maximumf %24, %25 : vector<16x1xf32>
      %cst_15 = arith.constant 9.99999974E-6 : f32
      %27 = vector.broadcast %cst_15 : f32 to vector<16x1xf32>
      %28 = arith.addf %26, %27 : vector<16x1xf32>
      %29 = math.rsqrt %28 : vector<16x1xf32>
      %30 = arith.mulf %17, %29 : vector<16x1xf32>
      %31 = vector.broadcast %29 : vector<16x1xf32> to vector<16x128xf32>
      %32 = arith.mulf %13, %31 : vector<16x128xf32>
      %33 = vector.broadcast %30 : vector<16x1xf32> to vector<16x128xf32>
      %34 = arith.subf %32, %33 : vector<16x128xf32>
      %35 = vector.broadcast %5 : vector<1x128xf32> to vector<16x128xf32>
      %36 = arith.mulf %34, %35 : vector<16x128xf32>
      %37 = vector.broadcast %6 : vector<1x128xf32> to vector<16x128xf32>
      %38 = arith.addf %36, %37 : vector<16x128xf32>
      %39 = arith.index_cast %arg10 : i32 to index
      %c0_16 = arith.constant 0 : index
      %c0_17 = arith.constant 0 : index
      %40 = vector.load %arg8[%39, %c0_16, %c0_17] : memref<2x16x128xf32, #tpu.memory_space<vmem>>, vector<1x16x128xf32>
      %41 = vector.shape_cast %40 : vector<1x16x128xf32> to vector<16x128xf32>
      %42 = vector.shape_cast %38 : vector<16x128xf32> to vector<1x16x128xf32>
      tpu.vector_store %arg8[%39, %c0_16, %c0_17], %42 {strides = array<i32>} : memref<2x16x128xf32, #tpu.memory_space<vmem>>, vector<1x16x128xf32>,
    }
    %c2_i32_9 = arith.constant 2 : i32
    return
  }
  func.func @transform_0(%arg0: i32, %arg1: i32) -> (i32, i32) {
    %c0_i32 = arith.constant 0 : i32
    %c0_i32_0 = arith.constant 0 : i32
    return %arg0, %c0_i32 : i32, i32
  }
  func.func @transform_1(%arg0: i32, %arg1: i32) -> (i32, i32) {
    %c0_i32 = arith.constant 0 : i32
    %c0_i32_0 = arith.constant 0 : i32
    %c0_i32_1 = arith.constant 0 : i32
    return %c0_i32, %c0_i32_0 : i32, i32
  }
  func.func @transform_2(%arg0: i32, %arg1: i32) -> (i32, i32) {
    %c0_i32 = arith.constant 0 : i32
    %c0_i32_0 = arith.constant 0 : i32
    return %arg1, %c0_i32 : i32, i32
  }
  func.func @transform_3(%arg0: i32, %arg1: i32) -> (i32, i32) {
    %c0_i32 = arith.constant 0 : i32
    %c0_i32_0 = arith.constant 0 : i32
    return %arg1, %c0_i32 : i32, i32
  }
  func.func @transform_4(%arg0: i32, %arg1: i32) -> (i32, i32) {
    %c0_i32 = arith.constant 0 : i32
    %c0_i32_0 = arith.constant 0 : i32
    %c0_i32_1 = arith.constant 0 : i32
    return %c0_i32, %c0_i32_0 : i32, i32
  }
  func.func @transform_5(%arg0: i32, %arg1: i32) -> (i32, i32) {
    %c0_i32 = arith.constant 0 : i32
    %c0_i32_0 = arith.constant 0 : i32
    %c0_i32_1 = arith.constant 0 : i32
    return %c0_i32, %c0_i32_0 : i32, i32
  }
  func.func @transform_6(%arg0: i32, %arg1: i32) -> (i32, i32, i32) {
    %c0_i32 = arith.constant 0 : i32
    %c0_i32_0 = arith.constant 0 : i32
    return %arg0, %arg1, %c0_i32 : i32, i32, i32
  }
}

</mosaic_0001>

<llo_original>
// kernel: tpu_custom_call.1
$region0: #{tpu_custom_call.1}
  #allocation0 [shape = 'u32[]', space=smem, size = 0x4, offset = 0x4, fixed_abs, tag = 'smem constant byte address 0x4 - core index']
  #allocation1 [shape = 'u32[144,128]{1,0:T(1,128)}', space=vmem, size = 0x12000, scoped, tag = 'internal scratch']
  #allocation2 [shape = 'bf16[32,128]{1,0:T(16,128)(2,1)}', space=vmem, size = 0x2000, scoped, tag = 'scratch operand']
  %s0 = inlined_call_operand.vmem [shape: bf16[64,32], index: 0, kind: input, shape index: {}]
  %s1 = inlined_call_operand.vmem [shape: bf16[32,128], index: 1, kind: input, shape index: {}]
  %s2 = inlined_call_operand.vmem [shape: bf16[16,16], index: 2, kind: input, shape index: {}]
  %s3 = inlined_call_operand.vmem [shape: f32[16,128], index: 3, kind: input, shape index: {}]
  %s4 = inlined_call_operand.vmem [shape: f32[1,128], index: 4, kind: input, shape index: {}]
  %s5 = inlined_call_operand.vmem [shape: f32[1,128], index: 5, kind: input, shape index: {}]
  %s6 = inlined_call_operand.hbm [shape: f32[4,16,128], index: 6, kind: output, shape index: {}]
  %s7 = sld [smem:[#allocation0]]
  $region68: #{tpu_custom_call.1} parent=0
    _
  %s9 = ssub.s32 1, %s7
  %s10 = scalar_select 0, %s9, %s7
  $region1: #{tpu_custom_call.1} parent=0
    #allocation3 [shape = 'u8[32768]{0}', space=vmem, size = 0x8000, scoped, tag = 'output window, operand 0']
    #allocation4 [shape = 's32[2]{0}', space=sflag, size = 0x8, scoped, tag = 'scoped memory for tpu_custom_call.1']
    %11 = vsyncpa [#allocation4], 0
    %s12 = scalar_lea.sflag [#allocation4], 1
    %13 = vsyncpa %s12, 0
    loop: start=0, step=1, limit=4
    $region2: #{tpu_custom_call.1} parent=1 // loop_pre_header
      _
    $region3: #{tpu_custom_call.1} parent=1 // loop_header
      %s15 = sphi 0, %s19
      %p16 = scmp.ge.s32.totalorder %s15, 4
      %s22 = sphi 0, %s34
      %s23 = sphi 0, %s30
      %s24 = sphi 0, %s22
      %s25 = sphi 0, %s23
      %s26 = sphi 0, %s24
      %s27 = sphi 0, %s25
      %s37 = sphi 0, %s39
      %s40 = sphi 0, %s37
      %s41 = sphi 0, %s40
      %s57 = sphi 0, %s41
      %s61 = sphi 0, %s61
      %s63 = sphi 0, %s61
      %s64 = sphi 0, %s63
      %s78 = sphi 0, %s64
      %s84 = sphi 0, %s86
      %s87 = sphi 0, %s84
      %s88 = sphi 0, %s87
      %s104 = sphi 0, %s88
      %s110 = sphi 0, %s112
      %s113 = sphi 0, %s110
      %s114 = sphi 0, %s113
      %s130 = sphi 0, %s114
      %s134 = sphi 0, %s134
      %s136 = sphi 0, %s134
      %s137 = sphi 0, %s136
      %s151 = sphi 0, %s137
      %s155 = sphi 0, %s155
      %s157 = sphi 0, %s155
      %s158 = sphi 0, %s157
      %s172 = sphi 0, %s158
      %s180 = sphi 0, %s182
      %s183 = sphi 0, %s180
      %s184 = sphi 0, %s183
      %s200 = sphi 0, %s184
    $region4: #{tpu_custom_call.1} parent=1 // loop_header_branch
      %18 = sbr.rel (%p16) target = $region8
    $region5: #{tpu_custom_call.1} parent=1 // loop_body
      %s20 = ssub.s32 %s15, 1
      %s21 = ssub.s32 %s15, 2
      %s28 = sadd.s32 1, %s23
      %p29 = scmp.ge.s32.totalorder %s28, 1
      %s30 = scalar_select %p29, 0, %s28
      %s31 = sadd.s32 1, %s22
      %s32 = scalar_select %p29, %s31, %s22
      %p33 = scmp.ge.s32.totalorder %s32, 2
      %s34 = scalar_select %p33, 0, %s32
      %s35 = ssub.s32 %s22, %s34
      %p36 = scmp.eq.s32.totalorder %s35, 0
      %s38 = sadd.s32 %s37, 1
      %s39 = scalar_select %p36, %s37, %s38
      %p42 = pneg %p36
      %p43 = scmp.eq.s32.totalorder %s15, 1
      %p44 = por %p42, %p43
      %p45 = scmp.ne.s32.totalorder %s37, %s40
      %p46 = scmp.eq.s32.totalorder %s15, 0
      %p47 = por %p45, %p46
      %p48 = scmp.ne.s32.totalorder %s37, %s40
      %p49 = scmp.eq.s32.totalorder %s20, 1
      %p50 = por %p48, %p49
      %p51 = scmp.ne.s32.totalorder %s40, %s41
      %p52 = scmp.eq.s32.totalorder %s20, 0
      %p53 = por %p51, %p52
      %p54 = scmp.ne.s32.totalorder %s40, %s41
      %p55 = scmp.eq.s32.totalorder %s21, 1
      %p56 = por %p54, %p55
      %p58 = scmp.ne.s32.totalorder %s41, %s57
      %p59 = scmp.eq.s32.totalorder %s21, 0
      %p60 = por %p58, %p59
      %s62 = sadd.s32 %s61, 1
      %p65 = scmp.eq.s32.totalorder %s15, 1
      %p66 = scmp.ne.s32.totalorder %s61, %s63
      %p67 = scmp.eq.s32.totalorder %s15, 0
      %p68 = por %p66, %p67
      %p69 = scmp.ne.s32.totalorder %s61, %s63
      %p70 = scmp.eq.s32.totalorder %s20, 1
      %p71 = por %p69, %p70
      %p72 = scmp.ne.s32.totalorder %s63, %s64
      %p73 = scmp.eq.s32.totalorder %s20, 0
      %p74 = por %p72, %p73
      %p75 = scmp.ne.s32.totalorder %s63, %s64
      %p76 = scmp.eq.s32.totalorder %s21, 1
      %p77 = por %p75, %p76
      %p79 = scmp.ne.s32.totalorder %s64, %s78
      %p80 = scmp.eq.s32.totalorder %s21, 0
      %p81 = por %p79, %p80
      %s82 = ssub.s32 %s23, %s30
      %p83 = scmp.eq.s32.totalorder %s82, 0
      %s85 = sadd.s32 %s84, 1
      %s86 = scalar_select %p83, %s84, %s85
      %p89 = pneg %p83
      %p90 = scmp.eq.s32.totalorder %s15, 1
      %p91 = por %p89, %p90
      %p92 = scmp.ne.s32.totalorder %s84, %s87
      %p93 = scmp.eq.s32.totalorder %s15, 0
      %p94 = por %p92, %p93
      %p95 = scmp.ne.s32.totalorder %s84, %s87
      %p96 = scmp.eq.s32.totalorder %s20, 1
      %p97 = por %p95, %p96
      %p98 = scmp.ne.s32.totalorder %s87, %s88
      %p99 = scmp.eq.s32.totalorder %s20, 0
      %p100 = por %p98, %p99
      %p101 = scmp.ne.s32.totalorder %s87, %s88
      %p102 = scmp.eq.s32.totalorder %s21, 1
      %p103 = por %p101, %p102
      %p105 = scmp.ne.s32.totalorder %s88, %s104
      %p106 = scmp.eq.s32.totalorder %s21, 0
      %p107 = por %p105, %p106
      %s108 = ssub.s32 %s23, %s30
      %p109 = scmp.eq.s32.totalorder %s108, 0
      %s111 = sadd.s32 %s110, 1
      %s112 = scalar_select %p109, %s110, %s111
      %p115 = pneg %p109
      %p116 = scmp.eq.s32.totalorder %s15, 1
      %p117 = por %p115, %p116
      %p118 = scmp.ne.s32.totalorder %s110, %s113
      %p119 = scmp.eq.s32.totalorder %s15, 0
      %p120 = por %p118, %p119
      %p121 = scmp.ne.s32.totalorder %s110, %s113
      %p122 = scmp.eq.s32.totalorder %s20, 1
      %p123 = por %p121, %p122
      %p124 = scmp.ne.s32.totalorder %s113, %s114
      %p125 = scmp.eq.s32.totalorder %s20, 0
      %p126 = por %p124, %p125
      %p127 = scmp.ne.s32.totalorder %s113, %s114
      %p128 = scmp.eq.s32.totalorder %s21, 1
      %p129 = por %p127, %p128
      %p131 = scmp.ne.s32.totalorder %s114, %s130
      %p132 = scmp.eq.s32.totalorder %s21, 0
      %p133 = por %p131, %p132
      %s135 = sadd.s32 %s134, 1
      %p138 = scmp.eq.s32.totalorder %s15, 1
      %p139 = scmp.ne.s32.totalorder %s134, %s136
      %p140 = scmp.eq.s32.totalorder %s15, 0
      %p141 = por %p139, %p140
      %p142 = scmp.ne.s32.totalorder %s134, %s136
      %p143 = scmp.eq.s32.totalorder %s20, 1
      %p144 = por %p142, %p143
      %p145 = scmp.ne.s32.totalorder %s136, %s137
      %p146 = scmp.eq.s32.totalorder %s20, 0
      %p147 = por %p145, %p146
      %p148 = scmp.ne.s32.totalorder %s136, %s137
      %p149 = scmp.eq.s32.totalorder %s21, 1
      %p150 = por %p148, %p149
      %p152 = scmp.ne.s32.totalorder %s137, %s151
      %p153 = scmp.eq.s32.totalorder %s21, 0
      %p154 = por %p152, %p153
      %s156 = sadd.s32 %s155, 1
      %p159 = scmp.eq.s32.totalorder %s15, 1
      %p160 = scmp.ne.s32.totalorder %s155, %s157
      %p161 = scmp.eq.s32.totalorder %s15, 0
      %p162 = por %p160, %p161
      %p163 = scmp.ne.s32.totalorder %s155, %s157
      %p164 = scmp.eq.s32.totalorder %s20, 1
      %p165 = por %p163, %p164
      %p166 = scmp.ne.s32.totalorder %s157, %s158
      %p167 = scmp.eq.s32.totalorder %s20, 0
      %p168 = por %p166, %p167
      %p169 = scmp.ne.s32.totalorder %s157, %s158
      %p170 = scmp.eq.s32.totalorder %s21, 1
      %p171 = por %p169, %p170
      %p173 = scmp.ne.s32.totalorder %s158, %s172
      %p174 = scmp.eq.s32.totalorder %s21, 0
      %p175 = por %p173, %p174
      %s176 = ssub.s32 %s22, %s34
      %s177 = ssub.s32 %s23, %s30
      %s178 = sor.u32 %s176, %s177
      %p179 = scmp.eq.s32.totalorder %s178, 0
      %s181 = sadd.s32 %s180, 1
      %s182 = scalar_select %p179, %s180, %s181
      %p185 = pneg %p179
      %p186 = scmp.eq.s32.totalorder %s15, 1
      %p187 = por %p185, %p186
      %p188 = scmp.ne.s32.totalorder %s180, %s183
      %p189 = scmp.eq.s32.totalorder %s15, 0
      %p190 = por %p188, %p189
      %p191 = scmp.ne.s32.totalorder %s180, %s183
      %p192 = scmp.eq.s32.totalorder %s20, 1
      %p193 = por %p191, %p192
      %p194 = scmp.ne.s32.totalorder %s183, %s184
      %p195 = scmp.eq.s32.totalorder %s20, 0
      %p196 = por %p194, %p195
      %p197 = scmp.ne.s32.totalorder %s183, %s184
      %p198 = scmp.eq.s32.totalorder %s21, 1
      %p199 = por %p197, %p198
      %p201 = scmp.ne.s32.totalorder %s184, %s200
      %p202 = scmp.eq.s32.totalorder %s21, 0
      %p203 = por %p201, %p202
      %p204 = scmp.le.s32.totalorder 1, %s15
      %p205 = scmp.lt.s32.totalorder %s15, 3
      %p206 = pnand %p204, %p205
      %p207 = pneg %p206
      // Predicated region
      $region9: #{tpu_custom_call.1} parent=5 // pred_check
        _
      $region10: #{tpu_custom_call.1} parent=5 // pred_check_branch
        %209 = sbr.rel (%p206) target = $region12
      $region11: #{tpu_custom_call.1} parent=5 // pred_region
        %s210 = ssub.s32 %s15, 1
        // Predicated region
        $region13: #{tpu_custom_call.1} parent=11 // pred_check
          %p211 = pneg %p74
        $region14: #{tpu_custom_call.1} parent=11 // pred_check_branch
          %213 = sbr.rel (%p211) target = $region16
        $region15: #{tpu_custom_call.1} parent=11 // pred_region
          _
        $region16: #{tpu_custom_call.1} parent=11 // pred_fallthru
          _
        // Predicated region
        $region17: #{tpu_custom_call.1} parent=11 // pred_check
          %p214 = pneg %p100
        $region18: #{tpu_custom_call.1} parent=11 // pred_check_branch
          %216 = sbr.rel (%p214) target = $region20
        $region19: #{tpu_custom_call.1} parent=11 // pred_region
          %s217 = smul.u32 2, %s25
          %p218 = scmp.lt.s32.totalorder %s217, 1
          %s219 = scalar_select %p218, %s217, 1
          %s220 = smul.addr %s219, 4
          %s221 = scalar_lea.vmem %s2, %s220
          %s222 = smul.u32 2, %s25
        $region20: #{tpu_custom_call.1} parent=11 // pred_fallthru
          _
        // Predicated region
        $region21: #{tpu_custom_call.1} parent=11 // pred_check
          %p223 = pneg %p126
        $region22: #{tpu_custom_call.1} parent=11 // pred_check_branch
          %225 = sbr.rel (%p223) target = $region24
        $region23: #{tpu_custom_call.1} parent=11 // pred_region
          %s226 = smul.u32 2, %s25
          %p227 = scmp.lt.s32.totalorder %s226, 1
          %s228 = scalar_select %p227, %s226, 1
          %s229 = smul.addr %s228, 8
          %s230 = scalar_lea.vmem %s3, %s229
          %s231 = smul.u32 2, %s25
        $region24: #{tpu_custom_call.1} parent=11 // pred_fallthru
          _
        // Predicated region
        $region25: #{tpu_custom_call.1} parent=11 // pred_check
          %p232 = pneg %p147
        $region26: #{tpu_custom_call.1} parent=11 // pred_check_branch
          %234 = sbr.rel (%p232) target = $region28
        $region27: #{tpu_custom_call.1} parent=11 // pred_region
          _
        $region28: #{tpu_custom_call.1} parent=11 // pred_fallthru
          _
        // Predicated region
        $region29: #{tpu_custom_call.1} parent=11 // pred_check
          %p235 = pneg %p168
        $region30: #{tpu_custom_call.1} parent=11 // pred_check_branch
          %237 = sbr.rel (%p235) target = $region32
        $region31: #{tpu_custom_call.1} parent=11 // pred_region
          _
        $region32: #{tpu_custom_call.1} parent=11 // pred_fallthru
          _
      $region12: #{tpu_custom_call.1} parent=5 // pred_fallthru
        _
      %p238 = scmp.lt.s32.totalorder %s15, 2
      // Predicated region
      $region33: #{tpu_custom_call.1} parent=5 // pred_check
        %p239 = pneg %p238
      $region34: #{tpu_custom_call.1} parent=5 // pred_check_branch
        %241 = sbr.rel (%p239) target = $region36
      $region35: #{tpu_custom_call.1} parent=5 // pred_region
        // Predicated region
        $region37: #{tpu_custom_call.1} parent=35 // pred_check
          %p242 = pneg %p47
        $region38: #{tpu_custom_call.1} parent=35 // pred_check_branch
          %244 = sbr.rel (%p242) target = $region40
        $region39: #{tpu_custom_call.1} parent=35 // pred_region
          %s245 = smul.u32 4, %s22
          %p246 = scmp.lt.s32.totalorder %s245, 7
          %s247 = scalar_select %p246, %s245, 7
          %s248 = smul.addr %s247, 4
          %s249 = scalar_lea.vmem %s0, %s248
          %s250 = smul.u32 4, %s22
        $region40: #{tpu_custom_call.1} parent=35 // pred_fallthru
          _
      $region36: #{tpu_custom_call.1} parent=5 // pred_fallthru
        _
      %p251 = scmp.le.s32.totalorder 1, %s15
      %p252 = scmp.lt.s32.totalorder %s15, 3
      %p253 = pnand %p251, %p252
      %p254 = pneg %p253
      // Predicated region
      $region41: #{tpu_custom_call.1} parent=5 // pred_check
        _
      $region42: #{tpu_custom_call.1} parent=5 // pred_check_branch
        %256 = sbr.rel (%p253) target = $region44
      $region43: #{tpu_custom_call.1} parent=5 // pred_region
        %s257 = ssub.s32 %s15, 1
        %s258 = smul.u32 4, %s24
        %p259 = scmp.lt.s32.totalorder %s258, 7
        %s260 = scalar_select %p259, %s258, 7
        %s261 = smul.addr %s260, 4
        %s262 = scalar_lea.vmem %s0, %s261
        %p263 = pneg %p53
        %p264 = pneg %p50
        %p265 = pneg %p74
        %p266 = pneg %p71
        %s267 = smul.u32 2, %s25
        %p268 = scmp.lt.s32.totalorder %s267, 1
        %s269 = scalar_select %p268, %s267, 1
        %s270 = smul.addr %s269, 4
        %s271 = scalar_lea.vmem %s2, %s270
        %p272 = pneg %p100
        %p273 = pneg %p97
        %s274 = smul.u32 2, %s25
        %p275 = scmp.lt.s32.totalorder %s274, 1
        %s276 = scalar_select %p275, %s274, 1
        %s277 = smul.addr %s276, 8
        %s278 = scalar_lea.vmem %s3, %s277
        %p279 = pneg %p126
        %p280 = pneg %p123
        %p281 = pneg %p147
        %p282 = pneg %p144
        %p283 = pneg %p168
        %p284 = pneg %p165
        %p285 = pneg %p196
        %p286 = pneg %p193
        %s287 = sand.u32 %s183, 1
        %s288 = scalar_lea.sflag [#allocation4], %s287
        %s289 = sand.u32 %s183, 1
        %s290 = smul.addr %s289, 32
        %s291 = scalar_lea.vmem [#allocation3], %s290
        %s292 = smul.u32 4, %s24
        %p293 = scmp.lt.s32.totalorder %s292, 7
        %s294 = scalar_select %p293, %s292, 7
        %s295 = smul.addr %s294, 4
        %s296 = scalar_lea.vmem %s0, %s295
        %s297 = smul.u32 4, %s24
        %s298 = smul.u32 2, %s25
        %p299 = scmp.lt.s32.totalorder %s298, 1
        %s300 = scalar_select %p299, %s298, 1
        %s301 = smul.addr %s300, 4
        %s302 = scalar_lea.vmem %s2, %s301
        %s303 = smul.u32 2, %s25
        %s304 = smul.u32 2, %s25
        %p305 = scmp.lt.s32.totalorder %s304, 1
        %s306 = scalar_select %p305, %s304, 1
        %s307 = smul.addr %s306, 8
        %s308 = scalar_lea.vmem %s3, %s307
        %s309 = smul.u32 2, %s25
        %s310 = smul.u32 2, %s24
        %s311 = smul.u32 2, %s25
        %p313 = scmp.eq.s32.totalorder %s25, 0
        // Predicated region
        $region45: #{tpu_custom_call.1} parent=43 // pred_check
          %p314 = pneg %p313
        $region46: #{tpu_custom_call.1} parent=43 // pred_check_branch
          %316 = sbr.rel (%p314) target = $region48
        $region47: #{tpu_custom_call.1} parent=43 // pred_region
          %v317 = vld [vmem:[%s296] sm:$0xf]
          %v318 = vld [vmem:[%s296 + $0x4] sm:$0xf]
          %v319 = vld [vmem:[%s296 + $0x8] sm:$0xf]
          %v320 = vld [vmem:[%s296 + $0xc] sm:$0xf]
          %v321 = vld [vmem:[%s1] sm:$0xf]
          %v322 = vld [vmem:[%s1 + $0x4] sm:$0xf]
          %v323 = vld [vmem:[%s1 + $0x8] sm:$0xf]
          %v324 = vld [vmem:[%s1 + $0xc] sm:$0xf]
          %v329 = vunpack.c.l.b16 %v317
          %v330 = vunpack.c.l.b16 %v318
          %v331 = vunpack.c.l.b16 %v319
          %v332 = vunpack.c.l.b16 %v320
          %v333 = vpack.c.b16 %v330, %v329
          %v334 = vpack.c.b16 %v332, %v331
          %v339 = vunpack.c.l.b16 %v321
          %v340 = vunpack.c.l.b16 %v322
          %v341 = vunpack.c.l.b16 %v323
          %v342 = vunpack.c.l.b16 %v324
          %v343 = vpack.c.b16 %v340, %v339
          %v344 = vpack.c.b16 %v342, %v341
          %vm347 = vcmask 261120
          %v349 = vsel %vm347, %v333, 0
          %v352 = vsel %vm347, %v334, 0
          %354 = vmatprep.subr.bf16.mxu0 0
          %355 = vmatpush1.bf16.msra.mxu0 %v343
          %356 = vmatprep.subr.bf16.mxu0 0
          %357 = vmatpush1.bf16.msra.mxu0 %v344
          %358 = vmatprep.subr.bf16.mxu0 0
          %359 = vmatpush1.bf16.msra.mxu0 0
          %360 = vmatprep.subr.bf16.mxu0 0
          %361 = vmatpush1.bf16.msra.mxu0 0
          %362 = vmatprep.subr.bf16.mxu0 0
          %363 = vmatpush1.bf16.msra.mxu0 0
          %364 = vmatprep.subr.bf16.mxu0 0
          %365 = vmatpush1.bf16.msra.mxu0 0
          %366 = vmatprep.subr.bf16.mxu0 0
          %367 = vmatpush1.bf16.msra.mxu0 0
          %368 = vmatprep.subr.bf16.mxu0 0
          %369 = vmatpush1.bf16.msra.mxu0 0
          %370 = vmatprep.subr.bf16.mxu0 0
          %371 = vmatpush1.bf16.msra.mxu0 0
          %372 = vmatprep.subr.bf16.mxu0 0
          %373 = vmatpush1.bf16.msra.mxu0 0
          %374 = vmatprep.subr.bf16.mxu0 0
          %375 = vmatpush1.bf16.msra.mxu0 0
          %376 = vmatprep.subr.bf16.mxu0 0
          %377 = vmatpush1.bf16.msra.mxu0 0
          %378 = vmatprep.subr.bf16.mxu0 0
          %379 = vmatpush1.bf16.msra.mxu0 0
          %380 = vmatprep.subr.bf16.mxu0 0
          %381 = vmatpush1.bf16.msra.mxu0 0
          %382 = vmatprep.subr.bf16.mxu0 0
          %383 = vmatpush1.bf16.msra.mxu0 0
          %384 = vmatprep.subr.bf16.mxu0 0
          %385 = vmatpush1.bf16.msra.mxu0 0
          %386 = vmatprep.mubr.bf16.mxu0 0
          %387 = vmatmul.mubr.bf16.gmra.mrb[0].mxu0 %v349
          %v388 = vpop.f32.mrb[0].mxu0
          %v389 = vadd.f32 0.0, %v388
          %v390 = vpop.f32.mrb[0].mxu0
          %v391 = vpop.f32.mrb[0].mxu0
          %v392 = vadd.f32 0.0, %v391
          %v393 = vpop.f32.mrb[0].mxu0
          %394 = vmatprep.mubr.bf16.mxu0 0
          %395 = vmatmul.mubr.bf16.gmra.mrb[0].mxu0 %v352
          %v396 = vpop.f32.mrb[0].mxu0
          %v397 = vadd.f32 0.0, %v396
          %v398 = vpop.f32.mrb[0].mxu0
          %v399 = vpop.f32.mrb[0].mxu0
          %v400 = vadd.f32 0.0, %v399
          %v401 = vpop.f32.mrb[0].mxu0
          %402 = vdwg.mxu0
          %v403 = vpack.c.bf16 %v392, %v389
          %v404 = vpack.c.bf16 %v400, %v397
          %405 = vst [vmem:[#allocation2] sm:$0xff] %v403
          %406 = vst [vmem:[#allocation2 + $0x8] sm:$0xff] %v404
        $region48: #{tpu_custom_call.1} parent=43 // pred_fallthru
          _
        %v407 = vld [vmem:[%s302] sm:$0xf]
        %v408 = vld [vmem:[%s302 + $0x4] sm:$0xf]
        %v409 = vld [vmem:[%s308] sm:$0xff]
        %v410 = vld [vmem:[%s308 + $0x8] sm:$0xff]
        %v411 = vld [vmem:[%s4] sm:$0x1]
        %v412 = vld [vmem:[%s5] sm:$0x1]
        loop: start=0, step=1, limit=2
        $region49: #{tpu_custom_call.1} parent=43 // loop_pre_header
          _
        $region50: #{tpu_custom_call.1} parent=43 // loop_header
          %s414 = sphi 0, %s418
          %p415 = scmp.ge.s32.totalorder %s414, 2
        $region51: #{tpu_custom_call.1} parent=43 // loop_header_branch
          %417 = sbr.rel (%p415) target = $region55
        $region52: #{tpu_custom_call.1} parent=43 // loop_body
          %s419 = smul.u32 %s414, 16
          %s420 = sshra.s32 %s419, 4
          %s421 = sand.u32 %s419, 15
          %s422 = smul.addr %s420, 8
          %s423 = scalar_lea.vmem [#allocation2], %s422
          %v424 = vld [vmem:[%s423] sm:$0xff]
          %v427 = vunpack.c.l.b16 %v407
          %v428 = vunpack.c.l.b16 %v408
          %v429 = vpack.c.b16 %v428, %v427
          %vm430 = vcmask 130048
          %v432 = vsel %vm430, %v429, 0
          %434 = vmatprep.subr.bf16.mxu0 0
          %435 = vmatpush1.bf16.msra.mxu0 %v424
          %436 = vmatprep.subr.bf16.mxu0 0
          %437 = vmatpush1.bf16.msra.mxu0 0
          %438 = vmatprep.subr.bf16.mxu0 0
          %439 = vmatpush1.bf16.msra.mxu0 0
          %440 = vmatprep.subr.bf16.mxu0 0
          %441 = vmatpush1.bf16.msra.mxu0 0
          %442 = vmatprep.subr.bf16.mxu0 0
          %443 = vmatpush1.bf16.msra.mxu0 0
          %444 = vmatprep.subr.bf16.mxu0 0
          %445 = vmatpush1.bf16.msra.mxu0 0
          %446 = vmatprep.subr.bf16.mxu0 0
          %447 = vmatpush1.bf16.msra.mxu0 0
          %448 = vmatprep.subr.bf16.mxu0 0
          %449 = vmatpush1.bf16.msra.mxu0 0
          %450 = vmatprep.subr.bf16.mxu0 0
          %451 = vmatpush1.bf16.msra.mxu0 0
          %452 = vmatprep.subr.bf16.mxu0 0
          %453 = vmatpush1.bf16.msra.mxu0 0
          %454 = vmatprep.subr.bf16.mxu0 0
          %455 = vmatpush1.bf16.msra.mxu0 0
          %456 = vmatprep.subr.bf16.mxu0 0
          %457 = vmatpush1.bf16.msra.mxu0 0
          %458 = vmatprep.subr.bf16.mxu0 0
          %459 = vmatpush1.bf16.msra.mxu0 0
          %460 = vmatprep.subr.bf16.mxu0 0
          %461 = vmatpush1.bf16.msra.mxu0 0
          %462 = vmatprep.subr.bf16.mxu0 0
          %463 = vmatpush1.bf16.msra.mxu0 0
          %464 = vmatprep.subr.bf16.mxu0 0
          %465 = vmatpush1.bf16.msra.mxu0 0
          %466 = vmatprep.mubr.bf16.mxu0 0
          %467 = vmatmul.mubr.bf16.gmra.mrb[0].mxu0 %v432
          %v468 = vpop.f32.mrb[0].mxu0
          %v469 = vadd.f32 %v409, %v468
          %v470 = vpop.f32.mrb[0].mxu0
          %v471 = vpop.f32.mrb[0].mxu0
          %v472 = vadd.f32 %v410, %v471
          %v473 = vpop.f32.mrb[0].mxu0
          %474 = vdwg.mxu0
          %475 = vadd.xlane.f32.xlu0 %v469
          %v476 = vpop.xlane.xlu0 %475
          %477 = vadd.xlane.f32.xlu0 %v472
          %v478 = vpop.xlane.xlu0 %477
          %v479 = vmul.f32 %v476, 0.0078125
          %v480 = vmul.f32 %v478, 0.0078125
          %v481 = vmul.f32 %v469, %v469
          %v482 = vmul.f32 %v472, %v472
          %483 = vadd.xlane.f32.xlu0 %v481
          %v484 = vpop.xlane.xlu0 %483
          %485 = vadd.xlane.f32.xlu0 %v482
          %v486 = vpop.xlane.xlu0 %485
          %v487 = vmul.f32 %v484, 0.0078125
          %v488 = vmul.f32 %v486, 0.0078125
          %v489 = vmul.f32 %v479, %v479
          %v490 = vmul.f32 %v480, %v480
          %v491 = vsub.f32 %v487, %v489
          %v492 = vsub.f32 %v488, %v490
          %v493 = vmax.f32 %v491, 0.0
          %v494 = vmax.f32 %v492, 0.0
          %v495 = vadd.f32 %v493, 1e-05
          %v496 = vadd.f32 %v494, 1e-05
          %v497 = vrsqrt.pop %v495
          %v498 = vrsqrt.pop %v496
          %v499 = vmul.f32 %v479, %v497
          %v500 = vmul.f32 %v480, %v498
          %v501 = vmul.f32 %v469, %v497
          %v502 = vmul.f32 %v472, %v498
          %v503 = vsub.f32 %v501, %v499
          %v504 = vsub.f32 %v502, %v500
          %v506 = vlaneseq
          %v507 = vshrl.u32 %v506, 7
          %v508 = vsub.s32 0, %v507
          %v509 = vrot.slane %v411, %v508
          %v511 = vmul.f32 %v503, %v509
          %v512 = vmul.f32 %v504, %v509
          %v514 = vlaneseq
          %v515 = vshrl.u32 %v514, 7
          %v516 = vsub.s32 0, %v515
          %v517 = vrot.slane %v412, %v516
          %v519 = vadd.f32 %v511, %v517
          %v520 = vadd.f32 %v512, %v517
          %s521 = scalar_lea.vmem %s291, %s419 [#allocation3]
          %522 = vst [vmem:[%s521] sm:$0xff] %v519
          %523 = vst [vmem:[%s521 + $0x8] sm:$0xff] %v520
        $region53: #{tpu_custom_call.1} parent=43 // loop_footer
          %s418 = sadd.s32 1, %s414
        $region54: #{tpu_custom_call.1} parent=43 // loop_footer_branch
          %413 = sbr.rel target = $region50
        $region55: #{tpu_custom_call.1} parent=43 // loop_exit
          _
        %s524 = sand.u32 %s183, 1
        %s525 = scalar_lea.sflag [#allocation4], %s524
        %s526 = sand.u32 %s183, 1
        %s527 = smul.addr %s526, 32
        %s528 = scalar_lea.vmem [#allocation3], %s527
        // Predicated region
        $region56: #{tpu_custom_call.1} parent=43 // pred_check
          %p529 = pneg %p193
        $region57: #{tpu_custom_call.1} parent=43 // pred_check_branch
          %531 = sbr.rel (%p529) target = $region59
        $region58: #{tpu_custom_call.1} parent=43 // pred_region
          %s532 = smul.u32 2, %s24
          %s533 = smul.u32 2, %s25
          %s535 = ssub.s32 512, 512
          %536 = vsyncadd %s525, %s535
          %s537 = smul.addr %s532, 2
          %s538 = sadd.s32 %s533, %s537
          %s539 = smul.addr %s538, 128
          %s540 = scalar_lea.hbm %s6, %s539
          %s541 = sshll.u32 %s528, 4
          %s542 = int_to_ptr.vmem [resolvable:$true] %s541
          %547 = dma.vmem_to_hbm [thread:$0]  %s542, 512, %s540, %s525, 128, 128, 8
        $region59: #{tpu_custom_call.1} parent=43 // pred_fallthru
          _
      $region44: #{tpu_custom_call.1} parent=5 // pred_fallthru
        _
      %p548 = scmp.le.s32.totalorder 2, %s15
      // Predicated region
      $region60: #{tpu_custom_call.1} parent=5 // pred_check
        %p549 = pneg %p548
      $region61: #{tpu_custom_call.1} parent=5 // pred_check_branch
        %551 = sbr.rel (%p549) target = $region63
      $region62: #{tpu_custom_call.1} parent=5 // pred_region
        %s552 = ssub.s32 %s15, 2
        // Predicated region
        $region64: #{tpu_custom_call.1} parent=62 // pred_check
          %p553 = pneg %p199
        $region65: #{tpu_custom_call.1} parent=62 // pred_check_branch
          %555 = sbr.rel (%p553) target = $region67
        $region66: #{tpu_custom_call.1} parent=62 // pred_region
          %s556 = sand.u32 %s184, 1
          %s557 = scalar_lea.sflag [#allocation4], %s556
          %s558 = sand.u32 %s184, 1
          %s559 = smul.addr %s558, 32
          %s560 = scalar_lea.vmem [#allocation3], %s559
          %561 = dma.done %s557, 512
        $region67: #{tpu_custom_call.1} parent=62 // pred_fallthru
          _
      $region63: #{tpu_custom_call.1} parent=5 // pred_fallthru
        _
    $region6: #{tpu_custom_call.1} parent=1 // loop_footer
      %s19 = sadd.s32 1, %s15
    $region7: #{tpu_custom_call.1} parent=1 // loop_footer_branch
      %14 = sbr.rel target = $region3
    $region8: #{tpu_custom_call.1} parent=1 // loop_exit
      _
    %562 = vsyncpa [#allocation4], 1
    %s563 = scalar_lea.sflag [#allocation4], 1
    %564 = vsyncpa %s563, 1

// kernel: tpu_custom_call.1
$region0: #{tpu_custom_call.1}
  #allocation0 [shape = 'u32[]', space=smem, size = 0x4, offset = 0x4, fixed_abs, tag = 'smem constant byte address 0x4 - core index']
  #allocation1 [shape = 'u32[144,128]{1,0:T(1,128)}', space=vmem, size = 0x12000, scoped, tag = 'internal scratch']
  #allocation2 [shape = 'bf16[32,128]{1,0:T(16,128)(2,1)}', space=vmem, size = 0x2000, scoped, tag = 'scratch operand']
  %s0 = inlined_call_operand.vmem [shape: bf16[64,32], index: 0, kind: input, shape index: {}]
  %s1 = inlined_call_operand.vmem [shape: bf16[32,128], index: 1, kind: input, shape index: {}]
  %s2 = inlined_call_operand.vmem [shape: bf16[16,16], index: 2, kind: input, shape index: {}]
  %s3 = inlined_call_operand.vmem [shape: f32[16,128], index: 3, kind: input, shape index: {}]
  %s4 = inlined_call_operand.vmem [shape: f32[1,128], index: 4, kind: input, shape index: {}]
  %s5 = inlined_call_operand.vmem [shape: f32[1,128], index: 5, kind: input, shape index: {}]
  %s6 = inlined_call_operand.hbm [shape: f32[4,16,128], index: 6, kind: output, shape index: {}]
  %s7 = sld [smem:[#allocation0]]
  $region68: #{tpu_custom_call.1} parent=0
    _
  %s9 = ssub.s32 1, %s7
  %s10 = scalar_select 0, %s9, %s7
  $region1: #{tpu_custom_call.1} parent=0
    #allocation3 [shape = 'u8[32768]{0}', space=vmem, size = 0x8000, scoped, tag = 'output window, operand 0']
    #allocation4 [shape = 's32[2]{0}', space=sflag, size = 0x8, scoped, tag = 'scoped memory for tpu_custom_call.1']
    %11 = vsyncpa [#allocation4], 0
    %s12 = scalar_lea.sflag [#allocation4], 1
    %13 = vsyncpa %s12, 0
    loop: start=0, step=1, limit=4
    $region2: #{tpu_custom_call.1} parent=1 // loop_pre_header
      _
    $region3: #{tpu_custom_call.1} parent=1 // loop_header
      %s15 = sphi 0, %s19
      %p16 = scmp.ge.s32.totalorder %s15, 4
      %s22 = sphi 0, %s34
      %s23 = sphi 0, %s30
      %s24 = sphi 0, %s22
      %s25 = sphi 0, %s23
      %s26 = sphi 0, %s24
      %s27 = sphi 0, %s25
      %s37 = sphi 0, %s39
      %s40 = sphi 0, %s37
      %s41 = sphi 0, %s40
      %s57 = sphi 0, %s41
      %s61 = sphi 0, %s61
      %s63 = sphi 0, %s61
      %s64 = sphi 0, %s63
      %s78 = sphi 0, %s64
      %s84 = sphi 0, %s86
      %s87 = sphi 0, %s84
      %s88 = sphi 0, %s87
      %s104 = sphi 0, %s88
      %s110 = sphi 0, %s112
      %s113 = sphi 0, %s110
      %s114 = sphi 0, %s113
      %s130 = sphi 0, %s114
      %s134 = sphi 0, %s134
      %s136 = sphi 0, %s134
      %s137 = sphi 0, %s136
      %s151 = sphi 0, %s137
      %s155 = sphi 0, %s155
      %s157 = sphi 0, %s155
      %s158 = sphi 0, %s157
      %s172 = sphi 0, %s158
      %s180 = sphi 0, %s182
      %s183 = sphi 0, %s180
      %s184 = sphi 0, %s183
      %s200 = sphi 0, %s184
    $region4: #{tpu_custom_call.1} parent=1 // loop_header_branch
      %18 = sbr.rel (%p16) target = $region8
    $region5: #{tpu_custom_call.1} parent=1 // loop_body
      %s20 = ssub.s32 %s15, 1
      %s21 = ssub.s32 %s15, 2
      %s28 = sadd.s32 1, %s23
      %p29 = scmp.ge.s32.totalorder %s28, 1
      %s30 = scalar_select %p29, 0, %s28
      %s31 = sadd.s32 1, %s22
      %s32 = scalar_select %p29, %s31, %s22
      %p33 = scmp.ge.s32.totalorder %s32, 2
      %s34 = scalar_select %p33, 0, %s32
      %s35 = ssub.s32 %s22, %s34
      %p36 = scmp.eq.s32.totalorder %s35, 0
      %s38 = sadd.s32 %s37, 1
      %s39 = scalar_select %p36, %s37, %s38
      %p42 = pneg %p36
      %p43 = scmp.eq.s32.totalorder %s15, 1
      %p44 = por %p42, %p43
      %p45 = scmp.ne.s32.totalorder %s37, %s40
      %p46 = scmp.eq.s32.totalorder %s15, 0
      %p47 = por %p45, %p46
      %p48 = scmp.ne.s32.totalorder %s37, %s40
      %p49 = scmp.eq.s32.totalorder %s20, 1
      %p50 = por %p48, %p49
      %p51 = scmp.ne.s32.totalorder %s40, %s41
      %p52 = scmp.eq.s32.totalorder %s20, 0
      %p53 = por %p51, %p52
      %p54 = scmp.ne.s32.totalorder %s40, %s41
      %p55 = scmp.eq.s32.totalorder %s21, 1
      %p56 = por %p54, %p55
      %p58 = scmp.ne.s32.totalorder %s41, %s57
      %p59 = scmp.eq.s32.totalorder %s21, 0
      %p60 = por %p58, %p59
      %s62 = sadd.s32 %s61, 1
      %p65 = scmp.eq.s32.totalorder %s15, 1
      %p66 = scmp.ne.s32.totalorder %s61, %s63
      %p67 = scmp.eq.s32.totalorder %s15, 0
      %p68 = por %p66, %p67
      %p69 = scmp.ne.s32.totalorder %s61, %s63
      %p70 = scmp.eq.s32.totalorder %s20, 1
      %p71 = por %p69, %p70
      %p72 = scmp.ne.s32.totalorder %s63, %s64
      %p73 = scmp.eq.s32.totalorder %s20, 0
      %p74 = por %p72, %p73
      %p75 = scmp.ne.s32.totalorder %s63, %s64
      %p76 = scmp.eq.s32.totalorder %s21, 1
      %p77 = por %p75, %p76
      %p79 = scmp.ne.s32.totalorder %s64, %s78
      %p80 = scmp.eq.s32.totalorder %s21, 0
      %p81 = por %p79, %p80
      %s82 = ssub.s32 %s23, %s30
      %p83 = scmp.eq.s32.totalorder %s82, 0
      %s85 = sadd.s32 %s84, 1
      %s86 = scalar_select %p83, %s84, %s85
      %p89 = pneg %p83
      %p90 = scmp.eq.s32.totalorder %s15, 1
      %p91 = por %p89, %p90
      %p92 = scmp.ne.s32.totalorder %s84, %s87
      %p93 = scmp.eq.s32.totalorder %s15, 0
      %p94 = por %p92, %p93
      %p95 = scmp.ne.s32.totalorder %s84, %s87
      %p96 = scmp.eq.s32.totalorder %s20, 1
      %p97 = por %p95, %p96
      %p98 = scmp.ne.s32.totalorder %s87, %s88
      %p99 = scmp.eq.s32.totalorder %s20, 0
      %p100 = por %p98, %p99
      %p101 = scmp.ne.s32.totalorder %s87, %s88
      %p102 = scmp.eq.s32.totalorder %s21, 1
      %p103 = por %p101, %p102
      %p105 = scmp.ne.s32.totalorder %s88, %s104
      %p106 = scmp.eq.s32.totalorder %s21, 0
      %p107 = por %p105, %p106
      %s108 = ssub.s32 %s23, %s30
      %p109 = scmp.eq.s32.totalorder %s108, 0
      %s111 = sadd.s32 %s110, 1
      %s112 = scalar_select %p109, %s110, %s111
      %p115 = pneg %p109
      %p116 = scmp.eq.s32.totalorder %s15, 1
      %p117 = por %p115, %p116
      %p118 = scmp.ne.s32.totalorder %s110, %s113
      %p119 = scmp.eq.s32.totalorder %s15, 0
      %p120 = por %p118, %p119
      %p121 = scmp.ne.s32.totalorder %s110, %s113
      %p122 = scmp.eq.s32.totalorder %s20, 1
      %p123 = por %p121, %p122
      %p124 = scmp.ne.s32.totalorder %s113, %s114
      %p125 = scmp.eq.s32.totalorder %s20, 0
      %p126 = por %p124, %p125
      %p127 = scmp.ne.s32.totalorder %s113, %s114
      %p128 = scmp.eq.s32.totalorder %s21, 1
      %p129 = por %p127, %p128
      %p131 = scmp.ne.s32.totalorder %s114, %s130
      %p132 = scmp.eq.s32.totalorder %s21, 0
      %p133 = por %p131, %p132
      %s135 = sadd.s32 %s134, 1
      %p138 = scmp.eq.s32.totalorder %s15, 1
      %p139 = scmp.ne.s32.totalorder %s134, %s136
      %p140 = scmp.eq.s32.totalorder %s15, 0
      %p141 = por %p139, %p140
      %p142 = scmp.ne.s32.totalorder %s134, %s136
      %p143 = scmp.eq.s32.totalorder %s20, 1
      %p144 = por %p142, %p143
      %p145 = scmp.ne.s32.totalorder %s136, %s137
      %p146 = scmp.eq.s32.totalorder %s20, 0
      %p147 = por %p145, %p146
      %p148 = scmp.ne.s32.totalorder %s136, %s137
      %p149 = scmp.eq.s32.totalorder %s21, 1
      %p150 = por %p148, %p149
      %p152 = scmp.ne.s32.totalorder %s137, %s151
      %p153 = scmp.eq.s32.totalorder %s21, 0
      %p154 = por %p152, %p153
      %s156 = sadd.s32 %s155, 1
      %p159 = scmp.eq.s32.totalorder %s15, 1
      %p160 = scmp.ne.s32.totalorder %s155, %s157
      %p161 = scmp.eq.s32.totalorder %s15, 0
      %p162 = por %p160, %p161
      %p163 = scmp.ne.s32.totalorder %s155, %s157
      %p164 = scmp.eq.s32.totalorder %s20, 1
      %p165 = por %p163, %p164
      %p166 = scmp.ne.s32.totalorder %s157, %s158
      %p167 = scmp.eq.s32.totalorder %s20, 0
      %p168 = por %p166, %p167
      %p169 = scmp.ne.s32.totalorder %s157, %s158
      %p170 = scmp.eq.s32.totalorder %s21, 1
      %p171 = por %p169, %p170
      %p173 = scmp.ne.s32.totalorder %s158, %s172
      %p174 = scmp.eq.s32.totalorder %s21, 0
      %p175 = por %p173, %p174
      %s176 = ssub.s32 %s22, %s34
      %s177 = ssub.s32 %s23, %s30
      %s178 = sor.u32 %s176, %s177
      %p179 = scmp.eq.s32.totalorder %s178, 0
      %s181 = sadd.s32 %s180, 1
      %s182 = scalar_select %p179, %s180, %s181
      %p185 = pneg %p179
      %p186 = scmp.eq.s32.totalorder %s15, 1
      %p187 = por %p185, %p186
      %p188 = scmp.ne.s32.totalorder %s180, %s183
      %p189 = scmp.eq.s32.totalorder %s15, 0
      %p190 = por %p188, %p189
      %p191 = scmp.ne.s32.totalorder %s180, %s183
      %p192 = scmp.eq.s32.totalorder %s20, 1
      %p193 = por %p191, %p192
      %p194 = scmp.ne.s32.totalorder %s183, %s184
      %p195 = scmp.eq.s32.totalorder %s20, 0
      %p196 = por %p194, %p195
      %p197 = scmp.ne.s32.totalorder %s183, %s184
      %p198 = scmp.eq.s32.totalorder %s21, 1
      %p199 = por %p197, %p198
      %p201 = scmp.ne.s32.totalorder %s184, %s200
      %p202 = scmp.eq.s32.totalorder %s21, 0
      %p203 = por %p201, %p202
      %p204 = scmp.le.s32.totalorder 1, %s15
      %p205 = scmp.lt.s32.totalorder %s15, 3
      %p206 = pnand %p204, %p205
      %p207 = pneg %p206
      // Predicated region
      $region9: #{tpu_custom_call.1} parent=5 // pred_check
        _
      $region10: #{tpu_custom_call.1} parent=5 // pred_check_branch
        %209 = sbr.rel (%p206) target = $region12
      $region11: #{tpu_custom_call.1} parent=5 // pred_region
        %s210 = ssub.s32 %s15, 1
        // Predicated region
        $region13: #{tpu_custom_call.1} parent=11 // pred_check
          %p211 = pneg %p74
        $region14: #{tpu_custom_call.1} parent=11 // pred_check_branch
          %213 = sbr.rel (%p211) target = $region16
        $region15: #{tpu_custom_call.1} parent=11 // pred_region
          _
        $region16: #{tpu_custom_call.1} parent=11 // pred_fallthru
          _
        // Predicated region
        $region17: #{tpu_custom_call.1} parent=11 // pred_check
          %p214 = pneg %p100
        $region18: #{tpu_custom_call.1} parent=11 // pred_check_branch
          %216 = sbr.rel (%p214) target = $region20
        $region19: #{tpu_custom_call.1} parent=11 // pred_region
          %s217 = smul.u32 2, %s25
          %p218 = scmp.lt.s32.totalorder %s217, 1
          %s219 = scalar_select %p218, %s217, 1
          %s220 = smul.addr %s219, 4
          %s221 = scalar_lea.vmem %s2, %s220
          %s222 = smul.u32 2, %s25
        $region20: #{tpu_custom_call.1} parent=11 // pred_fallthru
          _
        // Predicated region
        $region21: #{tpu_custom_call.1} parent=11 // pred_check
          %p223 = pneg %p126
        $region22: #{tpu_custom_call.1} parent=11 // pred_check_branch
          %225 = sbr.rel (%p223) target = $region24
        $region23: #{tpu_custom_call.1} parent=11 // pred_region
          %s226 = smul.u32 2, %s25
          %p227 = scmp.lt.s32.totalorder %s226, 1
          %s228 = scalar_select %p227, %s226, 1
          %s229 = smul.addr %s228, 8
          %s230 = scalar_lea.vmem %s3, %s229
          %s231 = smul.u32 2, %s25
        $region24: #{tpu_custom_call.1} parent=11 // pred_fallthru
          _
        // Predicated region
        $region25: #{tpu_custom_call.1} parent=11 // pred_check
          %p232 = pneg %p147
        $region26: #{tpu_custom_call.1} parent=11 // pred_check_branch
          %234 = sbr.rel (%p232) target = $region28
        $region27: #{tpu_custom_call.1} parent=11 // pred_region
          _
        $region28: #{tpu_custom_call.1} parent=11 // pred_fallthru
          _
        // Predicated region
        $region29: #{tpu_custom_call.1} parent=11 // pred_check
          %p235 = pneg %p168
        $region30: #{tpu_custom_call.1} parent=11 // pred_check_branch
          %237 = sbr.rel (%p235) target = $region32
        $region31: #{tpu_custom_call.1} parent=11 // pred_region
          _
        $region32: #{tpu_custom_call.1} parent=11 // pred_fallthru
          _
      $region12: #{tpu_custom_call.1} parent=5 // pred_fallthru
        _
      %p238 = scmp.lt.s32.totalorder %s15, 2
      // Predicated region
      $region33: #{tpu_custom_call.1} parent=5 // pred_check
        %p239 = pneg %p238
      $region34: #{tpu_custom_call.1} parent=5 // pred_check_branch
        %241 = sbr.rel (%p239) target = $region36
      $region35: #{tpu_custom_call.1} parent=5 // pred_region
        // Predicated region
        $region37: #{tpu_custom_call.1} parent=35 // pred_check
          %p242 = pneg %p47
        $region38: #{tpu_custom_call.1} parent=35 // pred_check_branch
          %244 = sbr.rel (%p242) target = $region40
        $region39: #{tpu_custom_call.1} parent=35 // pred_region
          %s245 = smul.u32 4, %s22
          %p246 = scmp.lt.s32.totalorder %s245, 7
          %s247 = scalar_select %p246, %s245, 7
          %s248 = smul.addr %s247, 4
          %s249 = scalar_lea.vmem %s0, %s248
          %s250 = smul.u32 4, %s22
        $region40: #{tpu_custom_call.1} parent=35 // pred_fallthru
          _
      $region36: #{tpu_custom_call.1} parent=5 // pred_fallthru
        _
      %p251 = scmp.le.s32.totalorder 1, %s15
      %p252 = scmp.lt.s32.totalorder %s15, 3
      %p253 = pnand %p251, %p252
      %p254 = pneg %p253
      // Predicated region
      $region41: #{tpu_custom_call.1} parent=5 // pred_check
        _
      $region42: #{tpu_custom_call.1} parent=5 // pred_check_branch
        %256 = sbr.rel (%p253) target = $region44
      $region43: #{tpu_custom_call.1} parent=5 // pred_region
        %s257 = ssub.s32 %s15, 1
        %s258 = smul.u32 4, %s24
        %p259 = scmp.lt.s32.totalorder %s258, 7
        %s260 = scalar_select %p259, %s258, 7
        %s261 = smul.addr %s260, 4
        %s262 = scalar_lea.vmem %s0, %s261
        %p263 = pneg %p53
        %p264 = pneg %p50
        %p265 = pneg %p74
        %p266 = pneg %p71
        %s267 = smul.u32 2, %s25
        %p268 = scmp.lt.s32.totalorder %s267, 1
        %s269 = scalar_select %p268, %s267, 1
        %s270 = smul.addr %s269, 4
        %s271 = scalar_lea.vmem %s2, %s270
        %p272 = pneg %p100
        %p273 = pneg %p97
        %s274 = smul.u32 2, %s25
        %p275 = scmp.lt.s32.totalorder %s274, 1
        %s276 = scalar_select %p275, %s274, 1
        %s277 = smul.addr %s276, 8
        %s278 = scalar_lea.vmem %s3, %s277
        %p279 = pneg %p126
        %p280 = pneg %p123
        %p281 = pneg %p147
        %p282 = pneg %p144
        %p283 = pneg %p168
        %p284 = pneg %p165
        %p285 = pneg %p196
        %p286 = pneg %p193
        %s287 = sand.u32 %s183, 1
        %s288 = scalar_lea.sflag [#allocation4], %s287
        %s289 = sand.u32 %s183, 1
        %s290 = smul.addr %s289, 32
        %s291 = scalar_lea.vmem [#allocation3], %s290
        %s292 = smul.u32 4, %s24
        %p293 = scmp.lt.s32.totalorder %s292, 7
        %s294 = scalar_select %p293, %s292, 7
        %s295 = smul.addr %s294, 4
        %s296 = scalar_lea.vmem %s0, %s295
        %s297 = smul.u32 4, %s24
        %s298 = smul.u32 2, %s25
        %p299 = scmp.lt.s32.totalorder %s298, 1
        %s300 = scalar_select %p299, %s298, 1
        %s301 = smul.addr %s300, 4
        %s302 = scalar_lea.vmem %s2, %s301
        %s303 = smul.u32 2, %s25
        %s304 = smul.u32 2, %s25
        %p305 = scmp.lt.s32.totalorder %s304, 1
        %s306 = scalar_select %p305, %s304, 1
        %s307 = smul.addr %s306, 8
        %s308 = scalar_lea.vmem %s3, %s307
        %s309 = smul.u32 2, %s25
        %s310 = smul.u32 2, %s24
        %s311 = smul.u32 2, %s25
        %p313 = scmp.eq.s32.totalorder %s25, 0
        // Predicated region
        $region45: #{tpu_custom_call.1} parent=43 // pred_check
          %p314 = pneg %p313
        $region46: #{tpu_custom_call.1} parent=43 // pred_check_branch
          %316 = sbr.rel (%p314) target = $region48
        $region47: #{tpu_custom_call.1} parent=43 // pred_region
          %v317 = vld [vmem:[%s296] sm:$0xf]
          %v318 = vld [vmem:[%s296 + $0x4] sm:$0xf]
          %v319 = vld [vmem:[%s296 + $0x8] sm:$0xf]
          %v320 = vld [vmem:[%s296 + $0xc] sm:$0xf]
          %v321 = vld [vmem:[%s1] sm:$0xf]
          %v322 = vld [vmem:[%s1 + $0x4] sm:$0xf]
          %v323 = vld [vmem:[%s1 + $0x8] sm:$0xf]
          %v324 = vld [vmem:[%s1 + $0xc] sm:$0xf]
          %v329 = vunpack.c.l.b16 %v317
          %v330 = vunpack.c.l.b16 %v318
          %v331 = vunpack.c.l.b16 %v319
          %v332 = vunpack.c.l.b16 %v320
          %v333 = vpack.c.b16 %v330, %v329
          %v334 = vpack.c.b16 %v332, %v331
          %v339 = vunpack.c.l.b16 %v321
          %v340 = vunpack.c.l.b16 %v322
          %v341 = vunpack.c.l.b16 %v323
          %v342 = vunpack.c.l.b16 %v324
          %v343 = vpack.c.b16 %v340, %v339
          %v344 = vpack.c.b16 %v342, %v341
          %vm347 = vcmask 261120
          %v349 = vsel %vm347, %v333, 0
          %v352 = vsel %vm347, %v334, 0
          %354 = vmatprep.subr.bf16.mxu0 0
          %355 = vmatpush1.bf16.msra.mxu0 %v343
          %356 = vmatprep.subr.bf16.mxu0 0
          %357 = vmatpush1.bf16.msra.mxu0 %v344
          %358 = vmatprep.subr.bf16.mxu0 0
          %359 = vmatpush1.bf16.msra.mxu0 0
          %360 = vmatprep.subr.bf16.mxu0 0
          %361 = vmatpush1.bf16.msra.mxu0 0
          %362 = vmatprep.subr.bf16.mxu0 0
          %363 = vmatpush1.bf16.msra.mxu0 0
          %364 = vmatprep.subr.bf16.mxu0 0
          %365 = vmatpush1.bf16.msra.mxu0 0
          %366 = vmatprep.subr.bf16.mxu0 0
          %367 = vmatpush1.bf16.msra.mxu0 0
          %368 = vmatprep.subr.bf16.mxu0 0
          %369 = vmatpush1.bf16.msra.mxu0 0
          %370 = vmatprep.subr.bf16.mxu0 0
          %371 = vmatpush1.bf16.msra.mxu0 0
          %372 = vmatprep.subr.bf16.mxu0 0
          %373 = vmatpush1.bf16.msra.mxu0 0
          %374 = vmatprep.subr.bf16.mxu0 0
          %375 = vmatpush1.bf16.msra.mxu0 0
          %376 = vmatprep.subr.bf16.mxu0 0
          %377 = vmatpush1.bf16.msra.mxu0 0
          %378 = vmatprep.subr.bf16.mxu0 0
          %379 = vmatpush1.bf16.msra.mxu0 0
          %380 = vmatprep.subr.bf16.mxu0 0
          %381 = vmatpush1.bf16.msra.mxu0 0
          %382 = vmatprep.subr.bf16.mxu0 0
          %383 = vmatpush1.bf16.msra.mxu0 0
          %384 = vmatprep.subr.bf16.mxu0 0
          %385 = vmatpush1.bf16.msra.mxu0 0
          %386 = vmatprep.mubr.bf16.mxu0 0
          %387 = vmatmul.mubr.bf16.gmra.mrb[0].mxu0 %v349
          %v388 = vpop.f32.mrb[0].mxu0
          %v389 = vadd.f32 0.0, %v388
          %v390 = vpop.f32.mrb[0].mxu0
          %v391 = vpop.f32.mrb[0].mxu0
          %v392 = vadd.f32 0.0, %v391
          %v393 = vpop.f32.mrb[0].mxu0
          %394 = vmatprep.mubr.bf16.mxu0 0
          %395 = vmatmul.mubr.bf16.gmra.mrb[0].mxu0 %v352
          %v396 = vpop.f32.mrb[0].mxu0
          %v397 = vadd.f32 0.0, %v396
          %v398 = vpop.f32.mrb[0].mxu0
          %v399 = vpop.f32.mrb[0].mxu0
          %v400 = vadd.f32 0.0, %v399
          %v401 = vpop.f32.mrb[0].mxu0
          %402 = vdwg.mxu0
          %v403 = vpack.c.bf16 %v392, %v389
          %v404 = vpack.c.bf16 %v400, %v397
          %405 = vst [vmem:[#allocation2] sm:$0xff] %v403
          %406 = vst [vmem:[#allocation2 + $0x8] sm:$0xff] %v404
        $region48: #{tpu_custom_call.1} parent=43 // pred_fallthru
          _
        %v407 = vld [vmem:[%s302] sm:$0xf]
        %v408 = vld [vmem:[%s302 + $0x4] sm:$0xf]
        %v409 = vld [vmem:[%s308] sm:$0xff]
        %v410 = vld [vmem:[%s308 + $0x8] sm:$0xff]
        %v411 = vld [vmem:[%s4] sm:$0x1]
        %v412 = vld [vmem:[%s5] sm:$0x1]
        loop: start=0, step=1, limit=2
        $region49: #{tpu_custom_call.1} parent=43 // loop_pre_header
          _
        $region50: #{tpu_custom_call.1} parent=43 // loop_header
          %s414 = sphi 0, %s418
          %p415 = scmp.ge.s32.totalorder %s414, 2
        $region51: #{tpu_custom_call.1} parent=43 // loop_header_branch
          %417 = sbr.rel (%p415) target = $region55
        $region52: #{tpu_custom_call.1} parent=43 // loop_body
          %s419 = smul.u32 %s414, 16
          %s420 = sshra.s32 %s419, 4
          %s421 = sand.u32 %s419, 15
          %s422 = smul.addr %s420, 8
          %s423 = scalar_lea.vmem [#allocation2], %s422
          %v424 = vld [vmem:[%s423] sm:$0xff]
          %v427 = vunpack.c.l.b16 %v407
          %v428 = vunpack.c.l.b16 %v408
          %v429 = vpack.c.b16 %v428, %v427
          %vm430 = vcmask 130048
          %v432 = vsel %vm430, %v429, 0
          %434 = vmatprep.subr.bf16.mxu0 0
          %435 = vmatpush1.bf16.msra.mxu0 %v424
          %436 = vmatprep.subr.bf16.mxu0 0
          %437 = vmatpush1.bf16.msra.mxu0 0
          %438 = vmatprep.subr.bf16.mxu0 0
          %439 = vmatpush1.bf16.msra.mxu0 0
          %440 = vmatprep.subr.bf16.mxu0 0
          %441 = vmatpush1.bf16.msra.mxu0 0
          %442 = vmatprep.subr.bf16.mxu0 0
          %443 = vmatpush1.bf16.msra.mxu0 0
          %444 = vmatprep.subr.bf16.mxu0 0
          %445 = vmatpush1.bf16.msra.mxu0 0
          %446 = vmatprep.subr.bf16.mxu0 0
          %447 = vmatpush1.bf16.msra.mxu0 0
          %448 = vmatprep.subr.bf16.mxu0 0
          %449 = vmatpush1.bf16.msra.mxu0 0
          %450 = vmatprep.subr.bf16.mxu0 0
          %451 = vmatpush1.bf16.msra.mxu0 0
          %452 = vmatprep.subr.bf16.mxu0 0
          %453 = vmatpush1.bf16.msra.mxu0 0
          %454 = vmatprep.subr.bf16.mxu0 0
          %455 = vmatpush1.bf16.msra.mxu0 0
          %456 = vmatprep.subr.bf16.mxu0 0
          %457 = vmatpush1.bf16.msra.mxu0 0
          %458 = vmatprep.subr.bf16.mxu0 0
          %459 = vmatpush1.bf16.msra.mxu0 0
          %460 = vmatprep.subr.bf16.mxu0 0
          %461 = vmatpush1.bf16.msra.mxu0 0
          %462 = vmatprep.subr.bf16.mxu0 0
          %463 = vmatpush1.bf16.msra.mxu0 0
          %464 = vmatprep.subr.bf16.mxu0 0
          %465 = vmatpush1.bf16.msra.mxu0 0
          %466 = vmatprep.mubr.bf16.mxu0 0
          %467 = vmatmul.mubr.bf16.gmra.mrb[0].mxu0 %v432
          %v468 = vpop.f32.mrb[0].mxu0
          %v469 = vadd.f32 %v409, %v468
          %v470 = vpop.f32.mrb[0].mxu0
          %v471 = vpop.f32.mrb[0].mxu0
          %v472 = vadd.f32 %v410, %v471
          %v473 = vpop.f32.mrb[0].mxu0
          %474 = vdwg.mxu0
          %475 = vadd.xlane.f32.xlu0 %v469
          %v476 = vpop.xlane.xlu0 %475
          %477 = vadd.xlane.f32.xlu0 %v472
          %v478 = vpop.xlane.xlu0 %477
          %v479 = vmul.f32 %v476, 0.0078125
          %v480 = vmul.f32 %v478, 0.0078125
          %v481 = vmul.f32 %v469, %v469
          %v482 = vmul.f32 %v472, %v472
          %483 = vadd.xlane.f32.xlu0 %v481
          %v484 = vpop.xlane.xlu0 %483
          %485 = vadd.xlane.f32.xlu0 %v482
          %v486 = vpop.xlane.xlu0 %485
          %v487 = vmul.f32 %v484, 0.0078125
          %v488 = vmul.f32 %v486, 0.0078125
          %v489 = vmul.f32 %v479, %v479
          %v490 = vmul.f32 %v480, %v480
          %v491 = vsub.f32 %v487, %v489
          %v492 = vsub.f32 %v488, %v490
          %v493 = vmax.f32 %v491, 0.0
          %v494 = vmax.f32 %v492, 0.0
          %v495 = vadd.f32 %v493, 1e-05
          %v496 = vadd.f32 %v494, 1e-05
          %v497 = vrsqrt.pop %v495
          %v498 = vrsqrt.pop %v496
          %v499 = vmul.f32 %v479, %v497
          %v500 = vmul.f32 %v480, %v498
          %v501 = vmul.f32 %v469, %v497
          %v502 = vmul.f32 %v472, %v498
          %v503 = vsub.f32 %v501, %v499
          %v504 = vsub.f32 %v502, %v500
          %v506 = vlaneseq
          %v507 = vshrl.u32 %v506, 7
          %v508 = vsub.s32 0, %v507
          %v509 = vrot.slane %v411, %v508
          %v511 = vmul.f32 %v503, %v509
          %v512 = vmul.f32 %v504, %v509
          %v514 = vlaneseq
          %v515 = vshrl.u32 %v514, 7
          %v516 = vsub.s32 0, %v515
          %v517 = vrot.slane %v412, %v516
          %v519 = vadd.f32 %v511, %v517
          %v520 = vadd.f32 %v512, %v517
          %s521 = scalar_lea.vmem %s291, %s419 [#allocation3]
          %522 = vst [vmem:[%s521] sm:$0xff] %v519
          %523 = vst [vmem:[%s521 + $0x8] sm:$0xff] %v520
        $region53: #{tpu_custom_call.1} parent=43 // loop_footer
          %s418 = sadd.s32 1, %s414
        $region54: #{tpu_custom_call.1} parent=43 // loop_footer_branch
          %413 = sbr.rel target = $region50
        $region55: #{tpu_custom_call.1} parent=43 // loop_exit
          _
        %s524 = sand.u32 %s183, 1
        %s525 = scalar_lea.sflag [#allocation4], %s524
        %s526 = sand.u32 %s183, 1
        %s527 = smul.addr %s526, 32
        %s528 = scalar_lea.vmem [#allocation3], %s527
        // Predicated region
        $region56: #{tpu_custom_call.1} parent=43 // pred_check
          %p529 = pneg %p193
        $region57: #{tpu_custom_call.1} parent=43 // pred_check_branch
          %531 = sbr.rel (%p529) target = $region59
        $region58: #{tpu_custom_call.1} parent=43 // pred_region
          %s532 = smul.u32 2, %s24
          %s533 = smul.u32 2, %s25
          %s535 = ssub.s32 512, 512
          %536 = vsyncadd %s525, %s535
          %s537 = smul.addr %s532, 2
          %s538 = sadd.s32 %s533, %s537
          %s539 = smul.addr %s538, 128
          %s540 = scalar_lea.hbm %s6, %s539
          %s541 = sshll.u32 %s528, 4
          %s542 = int_to_ptr.vmem [resolvable:$true] %s541
          %547 = dma.vmem_to_hbm [thread:$0]  %s542, 512, %s540, %s525, 128, 128, 8
        $region59: #{tpu_custom_call.1} parent=43 // pred_fallthru
          _
      $region44: #{tpu_custom_call.1} parent=5 // pred_fallthru
        _
      %p548 = scmp.le.s32.totalorder 2, %s15
      // Predicated region
      $region60: #{tpu_custom_call.1} parent=5 // pred_check
        %p549 = pneg %p548
      $region61: #{tpu_custom_call.1} parent=5 // pred_check_branch
        %551 = sbr.rel (%p549) target = $region63
      $region62: #{tpu_custom_call.1} parent=5 // pred_region
        %s552 = ssub.s32 %s15, 2
        // Predicated region
        $region64: #{tpu_custom_call.1} parent=62 // pred_check
          %p553 = pneg %p199
        $region65: #{tpu_custom_call.1} parent=62 // pred_check_branch
          %555 = sbr.rel (%p553) target = $region67
        $region66: #{tpu_custom_call.1} parent=62 // pred_region
          %s556 = sand.u32 %s184, 1
          %s557 = scalar_lea.sflag [#allocation4], %s556
          %s558 = sand.u32 %s184, 1
          %s559 = smul.addr %s558, 32
          %s560 = scalar_lea.vmem [#allocation3], %s559
          %561 = dma.done %s557, 512
        $region67: #{tpu_custom_call.1} parent=62 // pred_fallthru
          _
      $region63: #{tpu_custom_call.1} parent=5 // pred_fallthru
        _
    $region6: #{tpu_custom_call.1} parent=1 // loop_footer
      %s19 = sadd.s32 1, %s15
    $region7: #{tpu_custom_call.1} parent=1 // loop_footer_branch
      %14 = sbr.rel target = $region3
    $region8: #{tpu_custom_call.1} parent=1 // loop_exit
      _
    %562 = vsyncpa [#allocation4], 1
    %s563 = scalar_lea.sflag [#allocation4], 1
    %564 = vsyncpa %s563, 1

</llo_original>
